<compile_context>
chip_gen: v6e
topology: v6e:2x2x1
jax: 0.10.0
libtpu: 0.0.40
codegen_flags: <defaults>
</compile_context>

<pallas_src>
import numpy as np
import jax
import jax.numpy as jnp
from jax.experimental import pallas as pl
from jax.experimental.pallas import tpu as pltpu


_VMEM_BUDGET = 20 * 1024 * 1024        # stay under the 32 MiB scoped default (v7x-safe)
_TARGET_STEP_BYTES = 4 * 1024 * 1024   # aim for >= ~4 MiB of HBM traffic per grid step


# ----------------------------------------------------------------------------
# Pattern A — fast path: symmetry-exploiting triangular kernel (last two axes)
# ----------------------------------------------------------------------------

def _make_symm_tri_kernel(T, TB):
    def kernel(ii_ref, jj_ref, a_ref, b_ref, out_hbm, s_buf, m_buf, sem):
        b = pl.program_id(0)
        t = pl.program_id(1)
        i = ii_ref[t]
        j = jj_ref[t]

        # S = (x[i,j] + x[j,i]^T) / 2 ; the mirror tile out[j,i] is S^T.
        a = a_ref[...]
        bt = jnp.swapaxes(b_ref[...], -1, -2)
        s = (a + bt) * 0.5
        s_buf[...] = s
        m_buf[...] = jnp.swapaxes(s, -1, -2)

        bc0 = b * TB
        row0 = pl.multiple_of(i * T, T)
        col0 = pl.multiple_of(j * T, T)
        dst_ij = out_hbm.at[pl.ds(bc0, TB), pl.ds(row0, T), pl.ds(col0, T)]
        dst_ji = out_hbm.at[pl.ds(bc0, TB), pl.ds(col0, T), pl.ds(row0, T)]
        cp_ij = pltpu.make_async_copy(s_buf, dst_ij, sem.at[0])
        cp_ji = pltpu.make_async_copy(m_buf, dst_ji, sem.at[1])

        # Start both output DMAs, then wait; the next step's input blocks are
        # prefetched by the pipeline while we block on the writes.
        cp_ij.start()

        @pl.when(i != j)                 # diagonal tiles are written only once
        def _():
            cp_ji.start()

        cp_ij.wait()

        @pl.when(i != j)
        def _():
            cp_ji.wait()

    return kernel


def _pick_tri_tiles(BC, L, itemsize):
    """Tile side T and bc-batch TB for the triangular kernel, or (None, None)."""
    T = None
    for cand in (512, 256, 128):
        if L % cand == 0 and L // cand >= 2:
            T = cand
            break
    if T is None:
        return None, None
    # Per bc-slice VMEM: 2 double-buffered input tiles + 2 output staging tiles.
    per_bc_vmem = (2 * 2 + 2) * T * T * itemsize
    per_bc_step_bytes = 4 * T * T * itemsize       # 2 tile reads + 2 tile writes
    tb = 1
    for cand in (16, 8, 4, 2, 1):
        if BC % cand == 0 and cand * per_bc_vmem <= _VMEM_BUDGET:
            tb = cand
            break
    # Don't over-batch once per-step traffic already meets the target.
    while tb > 1 and (tb // 2) * per_bc_step_bytes >= _TARGET_STEP_BYTES:
        tb //= 2
    return T, tb


def _symm_last2_tri(x3, T, TB):
    BC, L, _ = x3.shape
    NT = L // T
    tri = [(i, j) for i in range(NT) for j in range(i, NT)]
    i_idx = jnp.asarray([p[0] for p in tri], dtype=jnp.int32)
    j_idx = jnp.asarray([p[1] for p in tri], dtype=jnp.int32)
    ntt = len(tri)

    n = x3.size
    itemsize = x3.dtype.itemsize
    cost = pl.CostEstimate(
        flops=2 * n, transcendentals=0,
        bytes_accessed=int((2 * n + BC * NT * T * T) * itemsize))

    grid_spec = pltpu.PrefetchScalarGridSpec(
        num_scalar_prefetch=2,
        grid=(BC // TB, ntt),
        in_specs=[
            pl.BlockSpec((TB, T, T), lambda b, t, ii, jj: (b, ii[t], jj[t])),
            pl.BlockSpec((TB, T, T), lambda b, t, ii, jj: (b, jj[t], ii[t])),
        ],
        out_specs=pl.BlockSpec(memory_space=pl.ANY),   # written via manual DMA
        scratch_shapes=[
            pltpu.VMEM((TB, T, T), x3.dtype),          # S tile
            pltpu.VMEM((TB, T, T), x3.dtype),          # S^T (mirror) tile
            pltpu.SemaphoreType.DMA((2,)),
        ],
    )
    return pl.pallas_call(
        _make_symm_tri_kernel(T, TB),
        grid_spec=grid_spec,
        out_shape=jax.ShapeDtypeStruct((BC, L, L), x3.dtype),
        compiler_params=pltpu.CompilerParams(
            dimension_semantics=("parallel", "arbitrary")),
        cost_estimate=cost,
    )(i_idx, j_idx, x3, x3)


# ----------------------------------------------------------------------------
# Pattern A — fallback: auto-pipelined bc-batched kernel (last two axes)
# ----------------------------------------------------------------------------

def _symm_last2_kernel(a_ref, b_ref, o_ref):
    # Blocks are (TB, T, T): swapaxes, NOT .T (3-D .T would reverse all axes).
    o_ref[...] = (a_ref[...] + jnp.swapaxes(b_ref[...], -1, -2)) * 0.5


def _pick_simple_tiles(BC, L, itemsize):
    T = L
    for cand in (512, 256, 128):
        if L % cand == 0:
            T = cand
            break
    per_bc_vmem = 3 * 2 * T * T * itemsize         # a, b, out double-buffered
    per_bc_step_bytes = 3 * T * T * itemsize
    tb = 1
    for cand in (16, 8, 4, 2, 1):
        if BC % cand == 0 and cand * per_bc_vmem <= _VMEM_BUDGET:
            tb = cand
            break
    while tb > 1 and (tb // 2) * per_bc_step_bytes >= _TARGET_STEP_BYTES:
        tb //= 2
    return T, tb


def _symm_last2_simple(x3, T, TB):
    BC, L, _ = x3.shape
    n = x3.size
    itemsize = x3.dtype.itemsize
    cost = pl.CostEstimate(flops=2 * n, transcendentals=0,
                           bytes_accessed=3 * n * itemsize)
    # TODO(synk): when L is not a multiple of 128 the trailing dim lowers to
    # masked partial stores; padding L would make the output lane-dense.
    return pl.pallas_call(
        _symm_last2_kernel,
        grid=(BC // TB, L // T, L // T),
        in_specs=[
            pl.BlockSpec((TB, T, T), lambda b, i, j: (b, i, j)),
            pl.BlockSpec((TB, T, T), lambda b, i, j: (b, j, i)),
        ],
        out_specs=pl.BlockSpec((TB, T, T), lambda b, i, j: (b, i, j)),
        out_shape=jax.ShapeDtypeStruct((BC, L, L), x3.dtype),
        compiler_params=pltpu.CompilerParams(
            dimension_semantics=("parallel", "parallel", "parallel")),
        cost_estimate=cost,
    )(x3, x3)


def _symm_last2(x):
    """Symmetrize over the last two (equal-size) axes of x."""
    *lead, l1, l2 = x.shape
    assert l1 == l2, "symmetrized axes must have equal size"
    L = l1
    BC = int(np.prod(lead)) if lead else 1
    x3 = x.reshape(BC, L, L)                        # merge leading dims (free)
    itemsize = x.dtype.itemsize

    T, TB = _pick_tri_tiles(BC, L, itemsize)
    if T is not None:
        out = _symm_last2_tri(x3, T, TB)
    else:
        T, TB = _pick_simple_tiles(BC, L, itemsize)
        out = _symm_last2_simple(x3, T, TB)
    return out.reshape(x.shape)


# ----------------------------------------------------------------------------
# Pattern B — channels-last (B, L, L, C), swap of axes (-3, -2)
# ----------------------------------------------------------------------------

def _symm_mid_kernel(a_ref, b_ref, o_ref):
    # a: x[b, i-rows, :, :] -> (TI, L, C); b: x[b, :, i-rows, :] -> (L, TI, C)
    # One structured transpose of the leading dims (XLU) + dense block store,
    # instead of TI strided row gathers / partial stores.
    o_ref[...] = (a_ref[...] + jnp.swapaxes(b_ref[...], 0, 1)) * 0.5


def _pick_ti(L, C, itemsize):
    per_row = 3 * 2 * L * C * itemsize              # a, b, out double-buffered
    if per_row * L <= _VMEM_BUDGET:
        return L                                    # whole (L, L, C) slab per step
    for d in range(L - 1, 0, -1):                   # largest multiple-of-8 divisor
        if L % d == 0 and d % 8 == 0 and per_row * d <= _VMEM_BUDGET:
            return d
    # TODO(synk): huge L with no suitable divisor would need L padded to 8.
    return 8 if L % 8 == 0 else L


def _symm_mid2(x):
    """Symmetrize over axes 1 and 2 of a channels-last (B, L, L, C) tensor."""
    B, l1, l2, C = x.shape
    assert l1 == l2, "symmetrized axes must have equal size"
    L = l1
    itemsize = x.dtype.itemsize
    TI = _pick_ti(L, C, itemsize)
    n = x.size
    cost = pl.CostEstimate(flops=2 * n, transcendentals=0,
                           bytes_accessed=3 * n * itemsize)
    # TODO(synk): C < 128 leaves lanes masked on every load/store; a lane-dense
    # repack (merging j with C) and the triangular 2x-traffic trick used for
    # Pattern A could be extended here as well.
    return pl.pallas_call(
        _symm_mid_kernel,
        grid=(B, L // TI),
        in_specs=[
            pl.BlockSpec((None, TI, L, C), lambda b, i: (b, i, 0, 0)),
            pl.BlockSpec((None, L, TI, C), lambda b, i: (b, 0, i, 0)),
        ],
        out_specs=pl.BlockSpec((None, TI, L, C), lambda b, i: (b, i, 0, 0)),
        out_shape=jax.ShapeDtypeStruct((B, L, L, C), x.dtype),
        compiler_params=pltpu.CompilerParams(
            dimension_semantics=("parallel", "parallel")),
        cost_estimate=cost,
    )(x, x)


# ----------------------------------------------------------------------------
# Pattern parsing / module wrapper
# ----------------------------------------------------------------------------

def _parse_pattern(pattern):
    lhs, rhs = (side.split() for side in pattern.split("->"))
    if sorted(lhs) != sorted(rhs) or len(lhs) != len(set(lhs)):
        raise ValueError(f"unsupported Rearrange pattern: {pattern!r}")
    return tuple(lhs.index(a) for a in rhs)


def symm_apply(x, perm):
    nd = x.ndim
    assert len(perm) == nd
    swapped = [k for k in range(nd) if perm[k] != k]
    if not swapped:                                 # identity pattern: (x + x)/2
        return x
    if not (len(swapped) == 2
            and perm[swapped[0]] == swapped[1]
            and perm[swapped[1]] == swapped[0]):
        # TODO(synk): general einops permutations (more than one axis swap)
        # are not needed for Symm's symmetrization use and are not implemented.
        raise NotImplementedError("only single axis-swap patterns supported")
    a0, a1 = swapped
    if x.shape[a0] != x.shape[a1]:
        raise ValueError("swapped axes must have equal sizes")

    if (a0, a1) == (nd - 2, nd - 1):                # '... i j -> ... j i'
        return _symm_last2(x)
    if (a0, a1) == (nd - 3, nd - 2):                # '... i j d -> ... j i d'
        lead = x.shape[:a0]
        B = int(np.prod(lead)) if lead else 1
        L, C = x.shape[a0], x.shape[-1]
        out = _symm_mid2(x.reshape(B, L, L, C))
        return out.reshape(x.shape)
    # TODO(synk): swaps not adjacent to the trailing axes (unused in trx_single).
    raise NotImplementedError("unsupported axis-swap position")


class Symm:
    """Pallas equivalent of the PyTorch Symm(nn.Module)."""

    def __init__(self, pattern):
        self.pattern = pattern
        self.perm = _parse_pattern(pattern)

    def __call__(self, x):
        return symm_apply(x, self.perm)


# ----------------------------------------------------------------------------
# self-test
# ----------------------------------------------------------------------------

def _ref_symm(x, perm):
    return (x + jnp.transpose(x, perm)) * 0.5


if __name__ == "__main__":
    key = jax.random.PRNGKey(0)
    k1, k2, k3 = jax.random.split(key, 3)

    # Pattern B: channels-last pair features (B, L, L, C) -> vectorised kernel.
    x1 = jax.random.normal(k1, (2, 32, 32, 128), jnp.float32)
    out1 = jax.block_until_ready(Symm("b i j d -> b j i d")(x1))
    ref1 = jax.block_until_ready(_ref_symm(x1, (0, 2, 1, 3)))
    assert out1.shape == x1.shape
    np.testing.assert_allclose(np.asarray(out1), np.asarray(ref1),
                               rtol=1e-6, atol=1e-6)

    # Pattern A, triangular fast path: (B, C, L, L) with L a multiple of 128.
    x2 = jax.random.normal(k2, (2, 2, 256, 256), jnp.float32)
    out2 = jax.block_until_ready(Symm("b c i j -> b c j i")(x2))
    ref2 = jax.block_until_ready(_ref_symm(x2, (0, 1, 3, 2)))
    assert out2.shape == x2.shape
    np.testing.assert_allclose(np.asarray(out2), np.asarray(ref2),
                               rtol=1e-6, atol=1e-6)

    # Pattern A, fallback path: L not a multiple of 128 (full-extent tiles).
    x3 = jax.random.normal(k3, (2, 3, 48, 48), jnp.float32)
    out3 = jax.block_until_ready(Symm("b c i j -> b c j i")(x3))
    ref3 = jax.block_until_ready(_ref_symm(x3, (0, 1, 3, 2)))
    assert out3.shape == x3.shape
    np.testing.assert_allclose(np.asarray(out3), np.asarray(ref3),
                               rtol=1e-6, atol=1e-6)

    print("KERNEL_OK")
</pallas_src>

<mosaic_0001>
module attributes {stable_mosaic.version = 11 : i64} {
  func.func @_symm_mid_kernel(%arg0: i32, %arg1: i32, %arg2: memref<1x32x32x128xf32, #tpu.memory_space<vmem>>, %arg3: memref<1x32x32x128xf32, #tpu.memory_space<vmem>>, %arg4: memref<1x32x32x128xf32, #tpu.memory_space<vmem>>) attributes {dimension_semantics = [#tpu.dimension_semantics<parallel>, #tpu.dimension_semantics<parallel>], iteration_bounds = array<i64: 2, 1>, scalar_prefetch = 0 : i64, scratch_operands = 0 : i64, tpu.core_type = #tpu.core_type<tc>, window_params = [{transform_indices = @transform_0, window_bounds = array<i64: 1, 32, 32, 128>}, {transform_indices = @transform_1, window_bounds = array<i64: 1, 32, 32, 128>}, {transform_indices = @transform_2, window_bounds = array<i64: 1, 32, 32, 128>}]} {
    %c0 = arith.constant 0 : index
    %c0_0 = arith.constant 0 : index
    %c0_1 = arith.constant 0 : index
    %c0_2 = arith.constant 0 : index
    %0 = vector.load %arg2[%c0, %c0_0, %c0_1, %c0_2] : memref<1x32x32x128xf32, #tpu.memory_space<vmem>>, vector<1x32x32x128xf32>
    %1 = vector.shape_cast %0 : vector<1x32x32x128xf32> to vector<32x32x128xf32>
    %c0_3 = arith.constant 0 : index
    %c0_4 = arith.constant 0 : index
    %c0_5 = arith.constant 0 : index
    %c0_6 = arith.constant 0 : index
    %2 = vector.load %arg3[%c0_3, %c0_4, %c0_5, %c0_6] : memref<1x32x32x128xf32, #tpu.memory_space<vmem>>, vector<1x32x32x128xf32>
    %3 = vector.shape_cast %2 : vector<1x32x32x128xf32> to vector<32x32x128xf32>
    %4 = tpu.transpose %3, [1, 0, 2] : vector<32x32x128xf32> -> vector<32x32x128xf32>
    %5 = arith.addf %1, %4 : vector<32x32x128xf32>
    %cst = arith.constant 5.000000e-01 : f32
    %6 = vector.broadcast %cst : f32 to vector<32x32x128xf32>
    %7 = arith.mulf %5, %6 : vector<32x32x128xf32>
    %c0_7 = arith.constant 0 : index
    %c0_8 = arith.constant 0 : index
    %c0_9 = arith.constant 0 : index
    %c0_10 = arith.constant 0 : index
    %8 = vector.load %arg4[%c0_7, %c0_8, %c0_9, %c0_10] : memref<1x32x32x128xf32, #tpu.memory_space<vmem>>, vector<1x32x32x128xf32>
    %9 = vector.shape_cast %8 : vector<1x32x32x128xf32> to vector<32x32x128xf32>
    %10 = vector.shape_cast %7 : vector<32x32x128xf32> to vector<1x32x32x128xf32>
    tpu.vector_store %arg4[%c0_7, %c0_8, %c0_9, %c0_10], %10 {strides = array<i32>} : memref<1x32x32x128xf32, #tpu.memory_space<vmem>>, vector<1x32x32x128xf32>,
    return
  }
  func.func @transform_0(%arg0: i32, %arg1: i32) -> (i32, i32, i32, i32) {
    %c0_i32 = arith.constant 0 : i32
    %c0_i32_0 = arith.constant 0 : i32
    %c0_i32_1 = arith.constant 0 : i32
    return %arg0, %arg1, %c0_i32, %c0_i32_0 : i32, i32, i32, i32
  }
  func.func @transform_1(%arg0: i32, %arg1: i32) -> (i32, i32, i32, i32) {
    %c0_i32 = arith.constant 0 : i32
    %c0_i32_0 = arith.constant 0 : i32
    %c0_i32_1 = arith.constant 0 : i32
    return %arg0, %c0_i32, %arg1, %c0_i32_0 : i32, i32, i32, i32
  }
  func.func @transform_2(%arg0: i32, %arg1: i32) -> (i32, i32, i32, i32) {
    %c0_i32 = arith.constant 0 : i32
    %c0_i32_0 = arith.constant 0 : i32
    %c0_i32_1 = arith.constant 0 : i32
    return %arg0, %arg1, %c0_i32, %c0_i32_0 : i32, i32, i32, i32
  }
}

</mosaic_0001>

<llo_original>
// kernel: tpu_custom_call.1
$region0: #{tpu_custom_call.1}
  #allocation0 [shape = 'u32[]', space=smem, size = 0x4, offset = 0x4, fixed_abs, tag = 'smem constant byte address 0x4 - core index']
  #allocation1 [shape = 'u32[144,128]{1,0:T(1,128)}', space=vmem, size = 0x12000, scoped, tag = 'internal scratch']
  %s0 = inlined_call_operand.hbm [shape: f32[2,32,32,128], index: 0, kind: input, shape index: {}]
  %s1 = inlined_call_operand.hbm [shape: f32[2,32,32,128], index: 1, kind: input, shape index: {}]
  %s2 = inlined_call_operand.hbm [shape: f32[2,32,32,128], index: 2, kind: output, shape index: {}]
  %s3 = sld [smem:[#allocation0]]
  $region49: #{tpu_custom_call.1} parent=0
    _
  %s5 = ssub.s32 1, %s3
  %s6 = scalar_select 0, %s5, %s3
  $region1: #{tpu_custom_call.1} parent=0
    #allocation2 [shape = 'u8[1048576]{0}', space=vmem, size = 0x100000, scoped, tag = 'input window, operand 0']
    #allocation3 [shape = 's32[2]{0}', space=sflag, size = 0x8, scoped, tag = 'scoped memory for tpu_custom_call.1']
    #allocation4 [shape = 's32[2]{0}', space=sflag, size = 0x8, scoped, tag = 'scoped memory for tpu_custom_call.1']
    #allocation5 [shape = 'u8[1048576]{0}', space=vmem, size = 0x100000, scoped, tag = 'input window, operand 1']
    #allocation6 [shape = 's32[2]{0}', space=sflag, size = 0x8, scoped, tag = 'scoped memory for tpu_custom_call.1']
    #allocation7 [shape = 'u8[1048576]{0}', space=vmem, size = 0x100000, scoped, tag = 'output window, operand 0']
    %7 = vsyncpa [#allocation3], 0
    %s8 = scalar_lea.sflag [#allocation3], 1
    %9 = vsyncpa %s8, 0
    %10 = vsyncpa [#allocation6], 0
    %s11 = scalar_lea.sflag [#allocation6], 1
    %12 = vsyncpa %s11, 0
    %13 = vsyncpa [#allocation4], 0
    %s14 = scalar_lea.sflag [#allocation4], 1
    %15 = vsyncpa %s14, 0
    loop: start=0, step=1, limit=4
    $region2: #{tpu_custom_call.1} parent=1 // loop_pre_header
      _
    $region3: #{tpu_custom_call.1} parent=1 // loop_header
      %s17 = sphi 0, %s21
      %p18 = scmp.ge.s32.totalorder %s17, 4
      %s24 = sphi 0, %s36
      %s25 = sphi 0, %s32
      %s26 = sphi 0, %s24
      %s27 = sphi 0, %s25
      %s28 = sphi 0, %s26
      %s29 = sphi 0, %s27
      %s41 = sphi 0, %s43
      %s44 = sphi 0, %s41
      %s45 = sphi 0, %s44
      %s61 = sphi 0, %s45
      %s69 = sphi 0, %s71
      %s72 = sphi 0, %s69
      %s73 = sphi 0, %s72
      %s89 = sphi 0, %s73
      %s97 = sphi 0, %s99
      %s100 = sphi 0, %s97
      %s101 = sphi 0, %s100
      %s117 = sphi 0, %s101
    $region4: #{tpu_custom_call.1} parent=1 // loop_header_branch
      %20 = sbr.rel (%p18) target = $region8
    $region5: #{tpu_custom_call.1} parent=1 // loop_body
      %s22 = ssub.s32 %s17, 1
      %s23 = ssub.s32 %s17, 2
      %s30 = sadd.s32 1, %s25
      %p31 = scmp.ge.s32.totalorder %s30, 1
      %s32 = scalar_select %p31, 0, %s30
      %s33 = sadd.s32 1, %s24
      %s34 = scalar_select %p31, %s33, %s24
      %p35 = scmp.ge.s32.totalorder %s34, 2
      %s36 = scalar_select %p35, 0, %s34
      %s37 = ssub.s32 %s24, %s36
      %s38 = ssub.s32 %s25, %s32
      %s39 = sor.u32 %s37, %s38
      %p40 = scmp.eq.s32.totalorder %s39, 0
      %s42 = sadd.s32 %s41, 1
      %s43 = scalar_select %p40, %s41, %s42
      %p46 = pneg %p40
      %p47 = scmp.eq.s32.totalorder %s17, 1
      %p48 = por %p46, %p47
      %p49 = scmp.ne.s32.totalorder %s41, %s44
      %p50 = scmp.eq.s32.totalorder %s17, 0
      %p51 = por %p49, %p50
      %p52 = scmp.ne.s32.totalorder %s41, %s44
      %p53 = scmp.eq.s32.totalorder %s22, 1
      %p54 = por %p52, %p53
      %p55 = scmp.ne.s32.totalorder %s44, %s45
      %p56 = scmp.eq.s32.totalorder %s22, 0
      %p57 = por %p55, %p56
      %p58 = scmp.ne.s32.totalorder %s44, %s45
      %p59 = scmp.eq.s32.totalorder %s23, 1
      %p60 = por %p58, %p59
      %p62 = scmp.ne.s32.totalorder %s45, %s61
      %p63 = scmp.eq.s32.totalorder %s23, 0
      %p64 = por %p62, %p63
      %s65 = ssub.s32 %s24, %s36
      %s66 = ssub.s32 %s25, %s32
      %s67 = sor.u32 %s65, %s66
      %p68 = scmp.eq.s32.totalorder %s67, 0
      %s70 = sadd.s32 %s69, 1
      %s71 = scalar_select %p68, %s69, %s70
      %p74 = pneg %p68
      %p75 = scmp.eq.s32.totalorder %s17, 1
      %p76 = por %p74, %p75
      %p77 = scmp.ne.s32.totalorder %s69, %s72
      %p78 = scmp.eq.s32.totalorder %s17, 0
      %p79 = por %p77, %p78
      %p80 = scmp.ne.s32.totalorder %s69, %s72
      %p81 = scmp.eq.s32.totalorder %s22, 1
      %p82 = por %p80, %p81
      %p83 = scmp.ne.s32.totalorder %s72, %s73
      %p84 = scmp.eq.s32.totalorder %s22, 0
      %p85 = por %p83, %p84
      %p86 = scmp.ne.s32.totalorder %s72, %s73
      %p87 = scmp.eq.s32.totalorder %s23, 1
      %p88 = por %p86, %p87
      %p90 = scmp.ne.s32.totalorder %s73, %s89
      %p91 = scmp.eq.s32.totalorder %s23, 0
      %p92 = por %p90, %p91
      %s93 = ssub.s32 %s24, %s36
      %s94 = ssub.s32 %s25, %s32
      %s95 = sor.u32 %s93, %s94
      %p96 = scmp.eq.s32.totalorder %s95, 0
      %s98 = sadd.s32 %s97, 1
      %s99 = scalar_select %p96, %s97, %s98
      %p102 = pneg %p96
      %p103 = scmp.eq.s32.totalorder %s17, 1
      %p104 = por %p102, %p103
      %p105 = scmp.ne.s32.totalorder %s97, %s100
      %p106 = scmp.eq.s32.totalorder %s17, 0
      %p107 = por %p105, %p106
      %p108 = scmp.ne.s32.totalorder %s97, %s100
      %p109 = scmp.eq.s32.totalorder %s22, 1
      %p110 = por %p108, %p109
      %p111 = scmp.ne.s32.totalorder %s100, %s101
      %p112 = scmp.eq.s32.totalorder %s22, 0
      %p113 = por %p111, %p112
      %p114 = scmp.ne.s32.totalorder %s100, %s101
      %p115 = scmp.eq.s32.totalorder %s23, 1
      %p116 = por %p114, %p115
      %p118 = scmp.ne.s32.totalorder %s101, %s117
      %p119 = scmp.eq.s32.totalorder %s23, 0
      %p120 = por %p118, %p119
      %p121 = scmp.le.s32.totalorder 1, %s17
      %p122 = scmp.lt.s32.totalorder %s17, 3
      %p123 = pnand %p121, %p122
      %p124 = pneg %p123
      // Predicated region
      $region9: #{tpu_custom_call.1} parent=5 // pred_check
        _
      $region10: #{tpu_custom_call.1} parent=5 // pred_check_branch
        %126 = sbr.rel (%p123) target = $region12
      $region11: #{tpu_custom_call.1} parent=5 // pred_region
        %s127 = ssub.s32 %s17, 1
      $region12: #{tpu_custom_call.1} parent=5 // pred_fallthru
        _
      %p128 = scmp.lt.s32.totalorder %s17, 2
      // Predicated region
      $region13: #{tpu_custom_call.1} parent=5 // pred_check
        %p129 = pneg %p128
      $region14: #{tpu_custom_call.1} parent=5 // pred_check_branch
        %131 = sbr.rel (%p129) target = $region16
      $region15: #{tpu_custom_call.1} parent=5 // pred_region
        // Predicated region
        $region17: #{tpu_custom_call.1} parent=15 // pred_check
          %p132 = pneg %p51
        $region18: #{tpu_custom_call.1} parent=15 // pred_check_branch
          %134 = sbr.rel (%p132) target = $region20
        $region19: #{tpu_custom_call.1} parent=15 // pred_region
          %s135 = sand.u32 %s41, 1
          %s136 = scalar_lea.sflag [#allocation3], %s135
          %s137 = sand.u32 %s41, 1
          %s138 = smul.addr %s137, 1024
          %s139 = scalar_lea.vmem [#allocation2], %s138
          %s140 = smul.u32 32, %s25
          %s142 = ssub.s32 16384, 16384
          %143 = vsyncadd %s136, %s142
          %s144 = smul.addr %s140, 4
          %s145 = smul.addr %s24, 128
          %s146 = sadd.s32 %s144, %s145
          %s147 = smul.addr %s146, 128
          %s148 = scalar_lea.hbm %s0, %s147
          %s149 = sshll.u32 %s139, 4
          %s150 = int_to_ptr.vmem [resolvable:$true] %s149
          %155 = dma.hbm_to_vmem [thread:$0]  %s148, 16384, %s150, %s136, 128, 128, 8
        $region20: #{tpu_custom_call.1} parent=15 // pred_fallthru
          _
        // Predicated region
        $region21: #{tpu_custom_call.1} parent=15 // pred_check
          %p156 = pneg %p79
        $region22: #{tpu_custom_call.1} parent=15 // pred_check_branch
          %158 = sbr.rel (%p156) target = $region24
        $region23: #{tpu_custom_call.1} parent=15 // pred_region
          %s159 = sand.u32 %s69, 1
          %s160 = scalar_lea.sflag [#allocation6], %s159
          %s161 = sand.u32 %s69, 1
          %s162 = smul.addr %s161, 1024
          %s163 = scalar_lea.vmem [#allocation5], %s162
          %s164 = smul.u32 4, %s25
          %s166 = ssub.s32 16384, 16384
          %167 = vsyncadd %s160, %s166
          %s168 = smul.addr %s24, 128
          %s169 = sadd.s32 %s164, %s168
          %s170 = smul.addr %s169, 128
          %s171 = scalar_lea.hbm %s1, %s170
          %s172 = sshll.u32 %s163, 4
          %s173 = int_to_ptr.vmem [resolvable:$true] %s172
          %178 = dma.hbm_to_vmem [thread:$0]  %s171, 16384, %s173, %s160, 128, 128, 8
        $region24: #{tpu_custom_call.1} parent=15 // pred_fallthru
          _
      $region16: #{tpu_custom_call.1} parent=5 // pred_fallthru
        _
      %p179 = scmp.le.s32.totalorder 1, %s17
      %p180 = scmp.lt.s32.totalorder %s17, 3
      %p181 = pnand %p179, %p180
      %p182 = pneg %p181
      // Predicated region
      $region25: #{tpu_custom_call.1} parent=5 // pred_check
        _
      $region26: #{tpu_custom_call.1} parent=5 // pred_check_branch
        %184 = sbr.rel (%p181) target = $region28
      $region27: #{tpu_custom_call.1} parent=5 // pred_region
        %s185 = ssub.s32 %s17, 1
        %s186 = sand.u32 %s44, 1
        %s187 = scalar_lea.sflag [#allocation3], %s186
        %s188 = sand.u32 %s44, 1
        %s189 = smul.addr %s188, 1024
        %s190 = scalar_lea.vmem [#allocation2], %s189
        // Predicated region
        $region29: #{tpu_custom_call.1} parent=27 // pred_check
          %p191 = pneg %p57
        $region30: #{tpu_custom_call.1} parent=27 // pred_check_branch
          %193 = sbr.rel (%p191) target = $region32
        $region31: #{tpu_custom_call.1} parent=27 // pred_region
          %194 = dma.done %s187, 16384
        $region32: #{tpu_custom_call.1} parent=27 // pred_fallthru
          _
        %s195 = sand.u32 %s72, 1
        %s196 = scalar_lea.sflag [#allocation6], %s195
        %s197 = sand.u32 %s72, 1
        %s198 = smul.addr %s197, 1024
        %s199 = scalar_lea.vmem [#allocation5], %s198
        // Predicated region
        $region33: #{tpu_custom_call.1} parent=27 // pred_check
          %p200 = pneg %p85
        $region34: #{tpu_custom_call.1} parent=27 // pred_check_branch
          %202 = sbr.rel (%p200) target = $region36
        $region35: #{tpu_custom_call.1} parent=27 // pred_region
          %203 = dma.done %s196, 16384
        $region36: #{tpu_custom_call.1} parent=27 // pred_fallthru
          _
        %s204 = sand.u32 %s44, 1
        %s205 = scalar_lea.sflag [#allocation3], %s204
        %s206 = sand.u32 %s44, 1
        %s207 = smul.addr %s206, 1024
        %s208 = scalar_lea.vmem [#allocation2], %s207
        %p209 = pneg %p57
        %p210 = pneg %p54
        %s211 = sand.u32 %s72, 1
        %s212 = scalar_lea.sflag [#allocation6], %s211
        %s213 = sand.u32 %s72, 1
        %s214 = smul.addr %s213, 1024
        %s215 = scalar_lea.vmem [#allocation5], %s214
        %p216 = pneg %p85
        %p217 = pneg %p82
        %p218 = pneg %p113
        %p219 = pneg %p110
        %s220 = sand.u32 %s100, 1
        %s221 = scalar_lea.sflag [#allocation4], %s220
        %s222 = sand.u32 %s100, 1
        %s223 = smul.addr %s222, 1024
        %s224 = scalar_lea.vmem [#allocation7], %s223
        %s225 = smul.u32 32, %s27
        %s226 = smul.u32 4, %s27
        %s227 = smul.u32 32, %s27
        %v228 = vld [vmem:[%s190] sm:$0xff]
        %v229 = vld [vmem:[%s190 + $0x8] sm:$0xff]
        %v230 = vld [vmem:[%s190 + $0x10] sm:$0xff]
        %v231 = vld [vmem:[%s190 + $0x18] sm:$0xff]
        %v232 = vld [vmem:[%s190 + $0x20] sm:$0xff]
        %v233 = vld [vmem:[%s190 + $0x28] sm:$0xff]
        %v234 = vld [vmem:[%s190 + $0x30] sm:$0xff]
        %v235 = vld [vmem:[%s190 + $0x38] sm:$0xff]
        %v236 = vld [vmem:[%s190 + $0x40] sm:$0xff]
        %v237 = vld [vmem:[%s190 + $0x48] sm:$0xff]
        %v238 = vld [vmem:[%s190 + $0x50] sm:$0xff]
        %v239 = vld [vmem:[%s190 + $0x58] sm:$0xff]
        %v240 = vld [vmem:[%s190 + $0x60] sm:$0xff]
        %v241 = vld [vmem:[%s190 + $0x68] sm:$0xff]
        %v242 = vld [vmem:[%s190 + $0x70] sm:$0xff]
        %v243 = vld [vmem:[%s190 + $0x78] sm:$0xff]
        %v244 = vld [vmem:[%s190 + $0x80] sm:$0xff]
        %v245 = vld [vmem:[%s190 + $0x88] sm:$0xff]
        %v246 = vld [vmem:[%s190 + $0x90] sm:$0xff]
        %v247 = vld [vmem:[%s190 + $0x98] sm:$0xff]
        %v248 = vld [vmem:[%s190 + $0xa0] sm:$0xff]
        %v249 = vld [vmem:[%s190 + $0xa8] sm:$0xff]
        %v250 = vld [vmem:[%s190 + $0xb0] sm:$0xff]
        %v251 = vld [vmem:[%s190 + $0xb8] sm:$0xff]
        %v252 = vld [vmem:[%s190 + $0xc0] sm:$0xff]
        %v253 = vld [vmem:[%s190 + $0xc8] sm:$0xff]
        %v254 = vld [vmem:[%s190 + $0xd0] sm:$0xff]
        %v255 = vld [vmem:[%s190 + $0xd8] sm:$0xff]
        %v256 = vld [vmem:[%s190 + $0xe0] sm:$0xff]
        %v257 = vld [vmem:[%s190 + $0xe8] sm:$0xff]
        %v258 = vld [vmem:[%s190 + $0xf0] sm:$0xff]
        %v259 = vld [vmem:[%s190 + $0xf8] sm:$0xff]
        %v260 = vld [vmem:[%s190 + $0x100] sm:$0xff]
        %v261 = vld [vmem:[%s190 + $0x108] sm:$0xff]
        %v262 = vld [vmem:[%s190 + $0x110] sm:$0xff]
        %v263 = vld [vmem:[%s190 + $0x118] sm:$0xff]
        %v264 = vld [vmem:[%s190 + $0x120] sm:$0xff]
        %v265 = vld [vmem:[%s190 + $0x128] sm:$0xff]
        %v266 = vld [vmem:[%s190 + $0x130] sm:$0xff]
        %v267 = vld [vmem:[%s190 + $0x138] sm:$0xff]
        %v268 = vld [vmem:[%s190 + $0x140] sm:$0xff]
        %v269 = vld [vmem:[%s190 + $0x148] sm:$0xff]
        %v270 = vld [vmem:[%s190 + $0x150] sm:$0xff]
        %v271 = vld [vmem:[%s190 + $0x158] sm:$0xff]
        %v272 = vld [vmem:[%s190 + $0x160] sm:$0xff]
        %v273 = vld [vmem:[%s190 + $0x168] sm:$0xff]
        %v274 = vld [vmem:[%s190 + $0x170] sm:$0xff]
        %v275 = vld [vmem:[%s190 + $0x178] sm:$0xff]
        %v276 = vld [vmem:[%s190 + $0x180] sm:$0xff]
        %v277 = vld [vmem:[%s190 + $0x188] sm:$0xff]
        %v278 = vld [vmem:[%s190 + $0x190] sm:$0xff]
        %v279 = vld [vmem:[%s190 + $0x198] sm:$0xff]
        %v280 = vld [vmem:[%s190 + $0x1a0] sm:$0xff]
        %v281 = vld [vmem:[%s190 + $0x1a8] sm:$0xff]
        %v282 = vld [vmem:[%s190 + $0x1b0] sm:$0xff]
        %v283 = vld [vmem:[%s190 + $0x1b8] sm:$0xff]
        %v284 = vld [vmem:[%s190 + $0x1c0] sm:$0xff]
        %v285 = vld [vmem:[%s190 + $0x1c8] sm:$0xff]
        %v286 = vld [vmem:[%s190 + $0x1d0] sm:$0xff]
        %v287 = vld [vmem:[%s190 + $0x1d8] sm:$0xff]
        %v288 = vld [vmem:[%s190 + $0x1e0] sm:$0xff]
        %v289 = vld [vmem:[%s190 + $0x1e8] sm:$0xff]
        %v290 = vld [vmem:[%s190 + $0x1f0] sm:$0xff]
        %v291 = vld [vmem:[%s190 + $0x1f8] sm:$0xff]
        %v292 = vld [vmem:[%s190 + $0x200] sm:$0xff]
        %v293 = vld [vmem:[%s190 + $0x208] sm:$0xff]
        %v294 = vld [vmem:[%s190 + $0x210] sm:$0xff]
        %v295 = vld [vmem:[%s190 + $0x218] sm:$0xff]
        %v296 = vld [vmem:[%s190 + $0x220] sm:$0xff]
        %v297 = vld [vmem:[%s190 + $0x228] sm:$0xff]
        %v298 = vld [vmem:[%s190 + $0x230] sm:$0xff]
        %v299 = vld [vmem:[%s190 + $0x238] sm:$0xff]
        %v300 = vld [vmem:[%s190 + $0x240] sm:$0xff]
        %v301 = vld [vmem:[%s190 + $0x248] sm:$0xff]
        %v302 = vld [vmem:[%s190 + $0x250] sm:$0xff]
        %v303 = vld [vmem:[%s190 + $0x258] sm:$0xff]
        %v304 = vld [vmem:[%s190 + $0x260] sm:$0xff]
        %v305 = vld [vmem:[%s190 + $0x268] sm:$0xff]
        %v306 = vld [vmem:[%s190 + $0x270] sm:$0xff]
        %v307 = vld [vmem:[%s190 + $0x278] sm:$0xff]
        %v308 = vld [vmem:[%s190 + $0x280] sm:$0xff]
        %v309 = vld [vmem:[%s190 + $0x288] sm:$0xff]
        %v310 = vld [vmem:[%s190 + $0x290] sm:$0xff]
        %v311 = vld [vmem:[%s190 + $0x298] sm:$0xff]
        %v312 = vld [vmem:[%s190 + $0x2a0] sm:$0xff]
        %v313 = vld [vmem:[%s190 + $0x2a8] sm:$0xff]
        %v314 = vld [vmem:[%s190 + $0x2b0] sm:$0xff]
        %v315 = vld [vmem:[%s190 + $0x2b8] sm:$0xff]
        %v316 = vld [vmem:[%s190 + $0x2c0] sm:$0xff]
        %v317 = vld [vmem:[%s190 + $0x2c8] sm:$0xff]
        %v318 = vld [vmem:[%s190 + $0x2d0] sm:$0xff]
        %v319 = vld [vmem:[%s190 + $0x2d8] sm:$0xff]
        %v320 = vld [vmem:[%s190 + $0x2e0] sm:$0xff]
        %v321 = vld [vmem:[%s190 + $0x2e8] sm:$0xff]
        %v322 = vld [vmem:[%s190 + $0x2f0] sm:$0xff]
        %v323 = vld [vmem:[%s190 + $0x2f8] sm:$0xff]
        %v324 = vld [vmem:[%s190 + $0x300] sm:$0xff]
        %v325 = vld [vmem:[%s190 + $0x308] sm:$0xff]
        %v326 = vld [vmem:[%s190 + $0x310] sm:$0xff]
        %v327 = vld [vmem:[%s190 + $0x318] sm:$0xff]
        %v328 = vld [vmem:[%s190 + $0x320] sm:$0xff]
        %v329 = vld [vmem:[%s190 + $0x328] sm:$0xff]
        %v330 = vld [vmem:[%s190 + $0x330] sm:$0xff]
        %v331 = vld [vmem:[%s190 + $0x338] sm:$0xff]
        %v332 = vld [vmem:[%s190 + $0x340] sm:$0xff]
        %v333 = vld [vmem:[%s190 + $0x348] sm:$0xff]
        %v334 = vld [vmem:[%s190 + $0x350] sm:$0xff]
        %v335 = vld [vmem:[%s190 + $0x358] sm:$0xff]
        %v336 = vld [vmem:[%s190 + $0x360] sm:$0xff]
        %v337 = vld [vmem:[%s190 + $0x368] sm:$0xff]
        %v338 = vld [vmem:[%s190 + $0x370] sm:$0xff]
        %v339 = vld [vmem:[%s190 + $0x378] sm:$0xff]
        %v340 = vld [vmem:[%s190 + $0x380] sm:$0xff]
        %v341 = vld [vmem:[%s190 + $0x388] sm:$0xff]
        %v342 = vld [vmem:[%s190 + $0x390] sm:$0xff]
        %v343 = vld [vmem:[%s190 + $0x398] sm:$0xff]
        %v344 = vld [vmem:[%s190 + $0x3a0] sm:$0xff]
        %v345 = vld [vmem:[%s190 + $0x3a8] sm:$0xff]
        %v346 = vld [vmem:[%s190 + $0x3b0] sm:$0xff]
        %v347 = vld [vmem:[%s190 + $0x3b8] sm:$0xff]
        %v348 = vld [vmem:[%s190 + $0x3c0] sm:$0xff]
        %v349 = vld [vmem:[%s190 + $0x3c8] sm:$0xff]
        %v350 = vld [vmem:[%s190 + $0x3d0] sm:$0xff]
        %v351 = vld [vmem:[%s190 + $0x3d8] sm:$0xff]
        %v352 = vld [vmem:[%s190 + $0x3e0] sm:$0xff]
        %v353 = vld [vmem:[%s190 + $0x3e8] sm:$0xff]
        %v354 = vld [vmem:[%s190 + $0x3f0] sm:$0xff]
        %v355 = vld [vmem:[%s190 + $0x3f8] sm:$0xff]
        %v356 = vld [vmem:[%s199] sm:$0xff]
        %v357 = vld [vmem:[%s199 + $0x8] sm:$0xff]
        %v358 = vld [vmem:[%s199 + $0x10] sm:$0xff]
        %v359 = vld [vmem:[%s199 + $0x18] sm:$0xff]
        %v360 = vld [vmem:[%s199 + $0x20] sm:$0xff]
        %v361 = vld [vmem:[%s199 + $0x28] sm:$0xff]
        %v362 = vld [vmem:[%s199 + $0x30] sm:$0xff]
        %v363 = vld [vmem:[%s199 + $0x38] sm:$0xff]
        %v364 = vld [vmem:[%s199 + $0x40] sm:$0xff]
        %v365 = vld [vmem:[%s199 + $0x48] sm:$0xff]
        %v366 = vld [vmem:[%s199 + $0x50] sm:$0xff]
        %v367 = vld [vmem:[%s199 + $0x58] sm:$0xff]
        %v368 = vld [vmem:[%s199 + $0x60] sm:$0xff]
        %v369 = vld [vmem:[%s199 + $0x68] sm:$0xff]
        %v370 = vld [vmem:[%s199 + $0x70] sm:$0xff]
        %v371 = vld [vmem:[%s199 + $0x78] sm:$0xff]
        %v372 = vld [vmem:[%s199 + $0x80] sm:$0xff]
        %v373 = vld [vmem:[%s199 + $0x88] sm:$0xff]
        %v374 = vld [vmem:[%s199 + $0x90] sm:$0xff]
        %v375 = vld [vmem:[%s199 + $0x98] sm:$0xff]
        %v376 = vld [vmem:[%s199 + $0xa0] sm:$0xff]
        %v377 = vld [vmem:[%s199 + $0xa8] sm:$0xff]
        %v378 = vld [vmem:[%s199 + $0xb0] sm:$0xff]
        %v379 = vld [vmem:[%s199 + $0xb8] sm:$0xff]
        %v380 = vld [vmem:[%s199 + $0xc0] sm:$0xff]
        %v381 = vld [vmem:[%s199 + $0xc8] sm:$0xff]
        %v382 = vld [vmem:[%s199 + $0xd0] sm:$0xff]
        %v383 = vld [vmem:[%s199 + $0xd8] sm:$0xff]
        %v384 = vld [vmem:[%s199 + $0xe0] sm:$0xff]
        %v385 = vld [vmem:[%s199 + $0xe8] sm:$0xff]
        %v386 = vld [vmem:[%s199 + $0xf0] sm:$0xff]
        %v387 = vld [vmem:[%s199 + $0xf8] sm:$0xff]
        %v388 = vld [vmem:[%s199 + $0x100] sm:$0xff]
        %v389 = vld [vmem:[%s199 + $0x108] sm:$0xff]
        %v390 = vld [vmem:[%s199 + $0x110] sm:$0xff]
        %v391 = vld [vmem:[%s199 + $0x118] sm:$0xff]
        %v392 = vld [vmem:[%s199 + $0x120] sm:$0xff]
        %v393 = vld [vmem:[%s199 + $0x128] sm:$0xff]
        %v394 = vld [vmem:[%s199 + $0x130] sm:$0xff]
        %v395 = vld [vmem:[%s199 + $0x138] sm:$0xff]
        %v396 = vld [vmem:[%s199 + $0x140] sm:$0xff]
        %v397 = vld [vmem:[%s199 + $0x148] sm:$0xff]
        %v398 = vld [vmem:[%s199 + $0x150] sm:$0xff]
        %v399 = vld [vmem:[%s199 + $0x158] sm:$0xff]
        %v400 = vld [vmem:[%s199 + $0x160] sm:$0xff]
        %v401 = vld [vmem:[%s199 + $0x168] sm:$0xff]
        %v402 = vld [vmem:[%s199 + $0x170] sm:$0xff]
        %v403 = vld [vmem:[%s199 + $0x178] sm:$0xff]
        %v404 = vld [vmem:[%s199 + $0x180] sm:$0xff]
        %v405 = vld [vmem:[%s199 + $0x188] sm:$0xff]
        %v406 = vld [vmem:[%s199 + $0x190] sm:$0xff]
        %v407 = vld [vmem:[%s199 + $0x198] sm:$0xff]
        %v408 = vld [vmem:[%s199 + $0x1a0] sm:$0xff]
        %v409 = vld [vmem:[%s199 + $0x1a8] sm:$0xff]
        %v410 = vld [vmem:[%s199 + $0x1b0] sm:$0xff]
        %v411 = vld [vmem:[%s199 + $0x1b8] sm:$0xff]
        %v412 = vld [vmem:[%s199 + $0x1c0] sm:$0xff]
        %v413 = vld [vmem:[%s199 + $0x1c8] sm:$0xff]
        %v414 = vld [vmem:[%s199 + $0x1d0] sm:$0xff]
        %v415 = vld [vmem:[%s199 + $0x1d8] sm:$0xff]
        %v416 = vld [vmem:[%s199 + $0x1e0] sm:$0xff]
        %v417 = vld [vmem:[%s199 + $0x1e8] sm:$0xff]
        %v418 = vld [vmem:[%s199 + $0x1f0] sm:$0xff]
        %v419 = vld [vmem:[%s199 + $0x1f8] sm:$0xff]
        %v420 = vld [vmem:[%s199 + $0x200] sm:$0xff]
        %v421 = vld [vmem:[%s199 + $0x208] sm:$0xff]
        %v422 = vld [vmem:[%s199 + $0x210] sm:$0xff]
        %v423 = vld [vmem:[%s199 + $0x218] sm:$0xff]
        %v424 = vld [vmem:[%s199 + $0x220] sm:$0xff]
        %v425 = vld [vmem:[%s199 + $0x228] sm:$0xff]
        %v426 = vld [vmem:[%s199 + $0x230] sm:$0xff]
        %v427 = vld [vmem:[%s199 + $0x238] sm:$0xff]
        %v428 = vld [vmem:[%s199 + $0x240] sm:$0xff]
        %v429 = vld [vmem:[%s199 + $0x248] sm:$0xff]
        %v430 = vld [vmem:[%s199 + $0x250] sm:$0xff]
        %v431 = vld [vmem:[%s199 + $0x258] sm:$0xff]
        %v432 = vld [vmem:[%s199 + $0x260] sm:$0xff]
        %v433 = vld [vmem:[%s199 + $0x268] sm:$0xff]
        %v434 = vld [vmem:[%s199 + $0x270] sm:$0xff]
        %v435 = vld [vmem:[%s199 + $0x278] sm:$0xff]
        %v436 = vld [vmem:[%s199 + $0x280] sm:$0xff]
        %v437 = vld [vmem:[%s199 + $0x288] sm:$0xff]
        %v438 = vld [vmem:[%s199 + $0x290] sm:$0xff]
        %v439 = vld [vmem:[%s199 + $0x298] sm:$0xff]
        %v440 = vld [vmem:[%s199 + $0x2a0] sm:$0xff]
        %v441 = vld [vmem:[%s199 + $0x2a8] sm:$0xff]
        %v442 = vld [vmem:[%s199 + $0x2b0] sm:$0xff]
        %v443 = vld [vmem:[%s199 + $0x2b8] sm:$0xff]
        %v444 = vld [vmem:[%s199 + $0x2c0] sm:$0xff]
        %v445 = vld [vmem:[%s199 + $0x2c8] sm:$0xff]
        %v446 = vld [vmem:[%s199 + $0x2d0] sm:$0xff]
        %v447 = vld [vmem:[%s199 + $0x2d8] sm:$0xff]
        %v448 = vld [vmem:[%s199 + $0x2e0] sm:$0xff]
        %v449 = vld [vmem:[%s199 + $0x2e8] sm:$0xff]
        %v450 = vld [vmem:[%s199 + $0x2f0] sm:$0xff]
        %v451 = vld [vmem:[%s199 + $0x2f8] sm:$0xff]
        %v452 = vld [vmem:[%s199 + $0x300] sm:$0xff]
        %v453 = vld [vmem:[%s199 + $0x308] sm:$0xff]
        %v454 = vld [vmem:[%s199 + $0x310] sm:$0xff]
        %v455 = vld [vmem:[%s199 + $0x318] sm:$0xff]
        %v456 = vld [vmem:[%s199 + $0x320] sm:$0xff]
        %v457 = vld [vmem:[%s199 + $0x328] sm:$0xff]
        %v458 = vld [vmem:[%s199 + $0x330] sm:$0xff]
        %v459 = vld [vmem:[%s199 + $0x338] sm:$0xff]
        %v460 = vld [vmem:[%s199 + $0x340] sm:$0xff]
        %v461 = vld [vmem:[%s199 + $0x348] sm:$0xff]
        %v462 = vld [vmem:[%s199 + $0x350] sm:$0xff]
        %v463 = vld [vmem:[%s199 + $0x358] sm:$0xff]
        %v464 = vld [vmem:[%s199 + $0x360] sm:$0xff]
        %v465 = vld [vmem:[%s199 + $0x368] sm:$0xff]
        %v466 = vld [vmem:[%s199 + $0x370] sm:$0xff]
        %v467 = vld [vmem:[%s199 + $0x378] sm:$0xff]
        %v468 = vld [vmem:[%s199 + $0x380] sm:$0xff]
        %v469 = vld [vmem:[%s199 + $0x388] sm:$0xff]
        %v470 = vld [vmem:[%s199 + $0x390] sm:$0xff]
        %v471 = vld [vmem:[%s199 + $0x398] sm:$0xff]
        %v472 = vld [vmem:[%s199 + $0x3a0] sm:$0xff]
        %v473 = vld [vmem:[%s199 + $0x3a8] sm:$0xff]
        %v474 = vld [vmem:[%s199 + $0x3b0] sm:$0xff]
        %v475 = vld [vmem:[%s199 + $0x3b8] sm:$0xff]
        %v476 = vld [vmem:[%s199 + $0x3c0] sm:$0xff]
        %v477 = vld [vmem:[%s199 + $0x3c8] sm:$0xff]
        %v478 = vld [vmem:[%s199 + $0x3d0] sm:$0xff]
        %v479 = vld [vmem:[%s199 + $0x3d8] sm:$0xff]
        %v480 = vld [vmem:[%s199 + $0x3e0] sm:$0xff]
        %v481 = vld [vmem:[%s199 + $0x3e8] sm:$0xff]
        %v482 = vld [vmem:[%s199 + $0x3f0] sm:$0xff]
        %v483 = vld [vmem:[%s199 + $0x3f8] sm:$0xff]
        %v484 = vcombine.low %v356, %v364
        %v485 = vcombine.high %v356, %v364
        %v487 = vunpack.c.l.s4 1983009808
        %v488 = vunpack.c.0.s8 %v487
        %v489 = vlaneseq
        %v490 = vshrl.u32 %v489, 7
        %v491 = vsub.s32 %v488, %v490
        %v492 = vrot.slane %v484, %v491
        %v494 = vunpack.c.l.s4 1983009808
        %v495 = vunpack.c.0.s8 %v494
        %v496 = vlaneseq
        %v497 = vshrl.u32 %v496, 7
        %v498 = vsub.s32 %v495, %v497
        %v499 = vrot.slane %v485, %v498
        %v500 = vcombine.low %v360, %v368
        %v501 = vcombine.high %v360, %v368
        %v503 = vunpack.c.l.s4 1983009808
        %v504 = vunpack.c.0.s8 %v503
        %v505 = vlaneseq
        %v506 = vshrl.u32 %v505, 7
        %v507 = vsub.s32 %v504, %v506
        %v508 = vrot.slane %v500, %v507
        %v510 = vunpack.c.l.s4 1983009808
        %v511 = vunpack.c.0.s8 %v510
        %v512 = vlaneseq
        %v513 = vshrl.u32 %v512, 7
        %v514 = vsub.s32 %v511, %v513
        %v515 = vrot.slane %v501, %v514
        %v516 = vcombine.low %v372, %v380
        %v517 = vcombine.high %v372, %v380
        %v519 = vunpack.c.l.s4 1983009808
        %v520 = vunpack.c.0.s8 %v519
        %v521 = vlaneseq
        %v522 = vshrl.u32 %v521, 7
        %v523 = vsub.s32 %v520, %v522
        %v524 = vrot.slane %v516, %v523
        %v526 = vunpack.c.l.s4 1983009808
        %v527 = vunpack.c.0.s8 %v526
        %v528 = vlaneseq
        %v529 = vshrl.u32 %v528, 7
        %v530 = vsub.s32 %v527, %v529
        %v531 = vrot.slane %v517, %v530
        %v532 = vcombine.low %v376, %v384
        %v533 = vcombine.high %v376, %v384
        %v535 = vunpack.c.l.s4 1983009808
        %v536 = vunpack.c.0.s8 %v535
        %v537 = vlaneseq
        %v538 = vshrl.u32 %v537, 7
        %v539 = vsub.s32 %v536, %v538
        %v540 = vrot.slane %v532, %v539
        %v542 = vunpack.c.l.s4 1983009808
        %v543 = vunpack.c.0.s8 %v542
        %v544 = vlaneseq
        %v545 = vshrl.u32 %v544, 7
        %v546 = vsub.s32 %v543, %v545
        %v547 = vrot.slane %v533, %v546
        %v548 = vcombine.low %v492, %v508
        %v549 = vcombine.high %v492, %v508
        %v551 = vunpack.c.l.s4 1934713408
        %v552 = vunpack.c.0.s8 %v551
        %v553 = vlaneseq
        %v554 = vshrl.u32 %v553, 7
        %v555 = vsub.s32 %v552, %v554
        %v556 = vrot.slane %v548, %v555
        %v558 = vunpack.c.l.s4 1934713408
        %v559 = vunpack.c.0.s8 %v558
        %v560 = vlaneseq
        %v561 = vshrl.u32 %v560, 7
        %v562 = vsub.s32 %v559, %v561
        %v563 = vrot.slane %v549, %v562
        %v564 = vcombine.low %v499, %v515
        %v565 = vcombine.high %v499, %v515
        %v567 = vunpack.c.l.s4 1934713408
        %v568 = vunpack.c.0.s8 %v567
        %v569 = vlaneseq
        %v570 = vshrl.u32 %v569, 7
        %v571 = vsub.s32 %v568, %v570
        %v572 = vrot.slane %v564, %v571
        %v574 = vunpack.c.l.s4 1934713408
        %v575 = vunpack.c.0.s8 %v574
        %v576 = vlaneseq
        %v577 = vshrl.u32 %v576, 7
        %v578 = vsub.s32 %v575, %v577
        %v579 = vrot.slane %v565, %v578
        %v580 = vcombine.low %v524, %v540
        %v581 = vcombine.high %v524, %v540
        %v583 = vunpack.c.l.s4 1934713408
        %v584 = vunpack.c.0.s8 %v583
        %v585 = vlaneseq
        %v586 = vshrl.u32 %v585, 7
        %v587 = vsub.s32 %v584, %v586
        %v588 = vrot.slane %v580, %v587
        %v590 = vunpack.c.l.s4 1934713408
        %v591 = vunpack.c.0.s8 %v590
        %v592 = vlaneseq
        %v593 = vshrl.u32 %v592, 7
        %v594 = vsub.s32 %v591, %v593
        %v595 = vrot.slane %v581, %v594
        %v596 = vcombine.low %v531, %v547
        %v597 = vcombine.high %v531, %v547
        %v599 = vunpack.c.l.s4 1934713408
        %v600 = vunpack.c.0.s8 %v599
        %v601 = vlaneseq
        %v602 = vshrl.u32 %v601, 7
        %v603 = vsub.s32 %v600, %v602
        %v604 = vrot.slane %v596, %v603
        %v606 = vunpack.c.l.s4 1934713408
        %v607 = vunpack.c.0.s8 %v606
        %v608 = vlaneseq
        %v609 = vshrl.u32 %v608, 7
        %v610 = vsub.s32 %v607, %v609
        %v611 = vrot.slane %v597, %v610
        %v612 = vcombine.low %v556, %v588
        %v613 = vcombine.high %v556, %v588
        %v614 = vcombine.low %v563, %v595
        %v615 = vcombine.high %v563, %v595
        %v616 = vcombine.low %v572, %v604
        %v617 = vcombine.high %v572, %v604
        %v618 = vcombine.low %v579, %v611
        %v619 = vcombine.high %v579, %v611
        %v620 = vcombine.low %v388, %v396
        %v621 = vcombine.high %v388, %v396
        %v623 = vunpack.c.l.s4 1983009808
        %v624 = vunpack.c.0.s8 %v623
        %v625 = vlaneseq
        %v626 = vshrl.u32 %v625, 7
        %v627 = vsub.s32 %v624, %v626
        %v628 = vrot.slane %v620, %v627
        %v630 = vunpack.c.l.s4 1983009808
        %v631 = vunpack.c.0.s8 %v630
        %v632 = vlaneseq
        %v633 = vshrl.u32 %v632, 7
        %v634 = vsub.s32 %v631, %v633
        %v635 = vrot.slane %v621, %v634
        %v636 = vcombine.low %v392, %v400
        %v637 = vcombine.high %v392, %v400
        %v639 = vunpack.c.l.s4 1983009808
        %v640 = vunpack.c.0.s8 %v639
        %v641 = vlaneseq
        %v642 = vshrl.u32 %v641, 7
        %v643 = vsub.s32 %v640, %v642
        %v644 = vrot.slane %v636, %v643
        %v646 = vunpack.c.l.s4 1983009808
        %v647 = vunpack.c.0.s8 %v646
        %v648 = vlaneseq
        %v649 = vshrl.u32 %v648, 7
        %v650 = vsub.s32 %v647, %v649
        %v651 = vrot.slane %v637, %v650
        %v652 = vcombine.low %v404, %v412
        %v653 = vcombine.high %v404, %v412
        %v655 = vunpack.c.l.s4 1983009808
        %v656 = vunpack.c.0.s8 %v655
        %v657 = vlaneseq
        %v658 = vshrl.u32 %v657, 7
        %v659 = vsub.s32 %v656, %v658
        %v660 = vrot.slane %v652, %v659
        %v662 = vunpack.c.l.s4 1983009808
        %v663 = vunpack.c.0.s8 %v662
        %v664 = vlaneseq
        %v665 = vshrl.u32 %v664, 7
        %v666 = vsub.s32 %v663, %v665
        %v667 = vrot.slane %v653, %v666
        %v668 = vcombine.low %v408, %v416
        %v669 = vcombine.high %v408, %v416
        %v671 = vunpack.c.l.s4 1983009808
        %v672 = vunpack.c.0.s8 %v671
        %v673 = vlaneseq
        %v674 = vshrl.u32 %v673, 7
        %v675 = vsub.s32 %v672, %v674
        %v676 = vrot.slane %v668, %v675
        %v678 = vunpack.c.l.s4 1983009808
        %v679 = vunpack.c.0.s8 %v678
        %v680 = vlaneseq
        %v681 = vshrl.u32 %v680, 7
        %v682 = vsub.s32 %v679, %v681
        %v683 = vrot.slane %v669, %v682
        %v684 = vcombine.low %v628, %v644
        %v685 = vcombine.high %v628, %v644
        %v687 = vunpack.c.l.s4 1934713408
        %v688 = vunpack.c.0.s8 %v687
        %v689 = vlaneseq
        %v690 = vshrl.u32 %v689, 7
        %v691 = vsub.s32 %v688, %v690
        %v692 = vrot.slane %v684, %v691
        %v694 = vunpack.c.l.s4 1934713408
        %v695 = vunpack.c.0.s8 %v694
        %v696 = vlaneseq
        %v697 = vshrl.u32 %v696, 7
        %v698 = vsub.s32 %v695, %v697
        %v699 = vrot.slane %v685, %v698
        %v700 = vcombine.low %v635, %v651
        %v701 = vcombine.high %v635, %v651
        %v703 = vunpack.c.l.s4 1934713408
        %v704 = vunpack.c.0.s8 %v703
        %v705 = vlaneseq
        %v706 = vshrl.u32 %v705, 7
        %v707 = vsub.s32 %v704, %v706
        %v708 = vrot.slane %v700, %v707
        %v710 = vunpack.c.l.s4 1934713408
        %v711 = vunpack.c.0.s8 %v710
        %v712 = vlaneseq
        %v713 = vshrl.u32 %v712, 7
        %v714 = vsub.s32 %v711, %v713
        %v715 = vrot.slane %v701, %v714
        %v716 = vcombine.low %v660, %v676
        %v717 = vcombine.high %v660, %v676
        %v719 = vunpack.c.l.s4 1934713408
        %v720 = vunpack.c.0.s8 %v719
        %v721 = vlaneseq
        %v722 = vshrl.u32 %v721, 7
        %v723 = vsub.s32 %v720, %v722
        %v724 = vrot.slane %v716, %v723
        %v726 = vunpack.c.l.s4 1934713408
        %v727 = vunpack.c.0.s8 %v726
        %v728 = vlaneseq
        %v729 = vshrl.u32 %v728, 7
        %v730 = vsub.s32 %v727, %v729
        %v731 = vrot.slane %v717, %v730
        %v732 = vcombine.low %v667, %v683
        %v733 = vcombine.high %v667, %v683
        %v735 = vunpack.c.l.s4 1934713408
        %v736 = vunpack.c.0.s8 %v735
        %v737 = vlaneseq
        %v738 = vshrl.u32 %v737, 7
        %v739 = vsub.s32 %v736, %v738
        %v740 = vrot.slane %v732, %v739
        %v742 = vunpack.c.l.s4 1934713408
        %v743 = vunpack.c.0.s8 %v742
        %v744 = vlaneseq
        %v745 = vshrl.u32 %v744, 7
        %v746 = vsub.s32 %v743, %v745
        %v747 = vrot.slane %v733, %v746
        %v748 = vcombine.low %v692, %v724
        %v749 = vcombine.high %v692, %v724
        %v750 = vcombine.low %v699, %v731
        %v751 = vcombine.high %v699, %v731
        %v752 = vcombine.low %v708, %v740
        %v753 = vcombine.high %v708, %v740
        %v754 = vcombine.low %v715, %v747
        %v755 = vcombine.high %v715, %v747
        %v756 = vcombine.low %v420, %v428
        %v757 = vcombine.high %v420, %v428
        %v759 = vunpack.c.l.s4 1983009808
        %v760 = vunpack.c.0.s8 %v759
        %v761 = vlaneseq
        %v762 = vshrl.u32 %v761, 7
        %v763 = vsub.s32 %v760, %v762
        %v764 = vrot.slane %v756, %v763
        %v766 = vunpack.c.l.s4 1983009808
        %v767 = vunpack.c.0.s8 %v766
        %v768 = vlaneseq
        %v769 = vshrl.u32 %v768, 7
        %v770 = vsub.s32 %v767, %v769
        %v771 = vrot.slane %v757, %v770
        %v772 = vcombine.low %v424, %v432
        %v773 = vcombine.high %v424, %v432
        %v775 = vunpack.c.l.s4 1983009808
        %v776 = vunpack.c.0.s8 %v775
        %v777 = vlaneseq
        %v778 = vshrl.u32 %v777, 7
        %v779 = vsub.s32 %v776, %v778
        %v780 = vrot.slane %v772, %v779
        %v782 = vunpack.c.l.s4 1983009808
        %v783 = vunpack.c.0.s8 %v782
        %v784 = vlaneseq
        %v785 = vshrl.u32 %v784, 7
        %v786 = vsub.s32 %v783, %v785
        %v787 = vrot.slane %v773, %v786
        %v788 = vcombine.low %v436, %v444
        %v789 = vcombine.high %v436, %v444
        %v791 = vunpack.c.l.s4 1983009808
        %v792 = vunpack.c.0.s8 %v791
        %v793 = vlaneseq
        %v794 = vshrl.u32 %v793, 7
        %v795 = vsub.s32 %v792, %v794
        %v796 = vrot.slane %v788, %v795
        %v798 = vunpack.c.l.s4 1983009808
        %v799 = vunpack.c.0.s8 %v798
        %v800 = vlaneseq
        %v801 = vshrl.u32 %v800, 7
        %v802 = vsub.s32 %v799, %v801
        %v803 = vrot.slane %v789, %v802
        %v804 = vcombine.low %v440, %v448
        %v805 = vcombine.high %v440, %v448
        %v807 = vunpack.c.l.s4 1983009808
        %v808 = vunpack.c.0.s8 %v807
        %v809 = vlaneseq
        %v810 = vshrl.u32 %v809, 7
        %v811 = vsub.s32 %v808, %v810
        %v812 = vrot.slane %v804, %v811
        %v814 = vunpack.c.l.s4 1983009808
        %v815 = vunpack.c.0.s8 %v814
        %v816 = vlaneseq
        %v817 = vshrl.u32 %v816, 7
        %v818 = vsub.s32 %v815, %v817
        %v819 = vrot.slane %v805, %v818
        %v820 = vcombine.low %v764, %v780
        %v821 = vcombine.high %v764, %v780
        %v823 = vunpack.c.l.s4 1934713408
        %v824 = vunpack.c.0.s8 %v823
        %v825 = vlaneseq
        %v826 = vshrl.u32 %v825, 7
        %v827 = vsub.s32 %v824, %v826
        %v828 = vrot.slane %v820, %v827
        %v830 = vunpack.c.l.s4 1934713408
        %v831 = vunpack.c.0.s8 %v830
        %v832 = vlaneseq
        %v833 = vshrl.u32 %v832, 7
        %v834 = vsub.s32 %v831, %v833
        %v835 = vrot.slane %v821, %v834
        %v836 = vcombine.low %v771, %v787
        %v837 = vcombine.high %v771, %v787
        %v839 = vunpack.c.l.s4 1934713408
        %v840 = vunpack.c.0.s8 %v839
        %v841 = vlaneseq
        %v842 = vshrl.u32 %v841, 7
        %v843 = vsub.s32 %v840, %v842
        %v844 = vrot.slane %v836, %v843
        %v846 = vunpack.c.l.s4 1934713408
        %v847 = vunpack.c.0.s8 %v846
        %v848 = vlaneseq
        %v849 = vshrl.u32 %v848, 7
        %v850 = vsub.s32 %v847, %v849
        %v851 = vrot.slane %v837, %v850
        %v852 = vcombine.low %v796, %v812
        %v853 = vcombine.high %v796, %v812
        %v855 = vunpack.c.l.s4 1934713408
        %v856 = vunpack.c.0.s8 %v855
        %v857 = vlaneseq
        %v858 = vshrl.u32 %v857, 7
        %v859 = vsub.s32 %v856, %v858
        %v860 = vrot.slane %v852, %v859
        %v862 = vunpack.c.l.s4 1934713408
        %v863 = vunpack.c.0.s8 %v862
        %v864 = vlaneseq
        %v865 = vshrl.u32 %v864, 7
        %v866 = vsub.s32 %v863, %v865
        %v867 = vrot.slane %v853, %v866
        %v868 = vcombine.low %v803, %v819
        %v869 = vcombine.high %v803, %v819
        %v871 = vunpack.c.l.s4 1934713408
        %v872 = vunpack.c.0.s8 %v871
        %v873 = vlaneseq
        %v874 = vshrl.u32 %v873, 7
        %v875 = vsub.s32 %v872, %v874
        %v876 = vrot.slane %v868, %v875
        %v878 = vunpack.c.l.s4 1934713408
        %v879 = vunpack.c.0.s8 %v878
        %v880 = vlaneseq
        %v881 = vshrl.u32 %v880, 7
        %v882 = vsub.s32 %v879, %v881
        %v883 = vrot.slane %v869, %v882
        %v884 = vcombine.low %v828, %v860
        %v885 = vcombine.high %v828, %v860
        %v886 = vcombine.low %v835, %v867
        %v887 = vcombine.high %v835, %v867
        %v888 = vcombine.low %v844, %v876
        %v889 = vcombine.high %v844, %v876
        %v890 = vcombine.low %v851, %v883
        %v891 = vcombine.high %v851, %v883
        %v892 = vcombine.low %v452, %v460
        %v893 = vcombine.high %v452, %v460
        %v895 = vunpack.c.l.s4 1983009808
        %v896 = vunpack.c.0.s8 %v895
        %v897 = vlaneseq
        %v898 = vshrl.u32 %v897, 7
        %v899 = vsub.s32 %v896, %v898
        %v900 = vrot.slane %v892, %v899
        %v902 = vunpack.c.l.s4 1983009808
        %v903 = vunpack.c.0.s8 %v902
        %v904 = vlaneseq
        %v905 = vshrl.u32 %v904, 7
        %v906 = vsub.s32 %v903, %v905
        %v907 = vrot.slane %v893, %v906
        %v908 = vcombine.low %v456, %v464
        %v909 = vcombine.high %v456, %v464
        %v911 = vunpack.c.l.s4 1983009808
        %v912 = vunpack.c.0.s8 %v911
        %v913 = vlaneseq
        %v914 = vshrl.u32 %v913, 7
        %v915 = vsub.s32 %v912, %v914
        %v916 = vrot.slane %v908, %v915
        %v918 = vunpack.c.l.s4 1983009808
        %v919 = vunpack.c.0.s8 %v918
        %v920 = vlaneseq
        %v921 = vshrl.u32 %v920, 7
        %v922 = vsub.s32 %v919, %v921
        %v923 = vrot.slane %v909, %v922
        %v924 = vcombine.low %v468, %v476
        %v925 = vcombine.high %v468, %v476
        %v927 = vunpack.c.l.s4 1983009808
        %v928 = vunpack.c.0.s8 %v927
        %v929 = vlaneseq
        %v930 = vshrl.u32 %v929, 7
        %v931 = vsub.s32 %v928, %v930
        %v932 = vrot.slane %v924, %v931
        %v934 = vunpack.c.l.s4 1983009808
        %v935 = vunpack.c.0.s8 %v934
        %v936 = vlaneseq
        %v937 = vshrl.u32 %v936, 7
        %v938 = vsub.s32 %v935, %v937
        %v939 = vrot.slane %v925, %v938
        %v940 = vcombine.low %v472, %v480
        %v941 = vcombine.high %v472, %v480
        %v943 = vunpack.c.l.s4 1983009808
        %v944 = vunpack.c.0.s8 %v943
        %v945 = vlaneseq
        %v946 = vshrl.u32 %v945, 7
        %v947 = vsub.s32 %v944, %v946
        %v948 = vrot.slane %v940, %v947
        %v950 = vunpack.c.l.s4 1983009808
        %v951 = vunpack.c.0.s8 %v950
        %v952 = vlaneseq
        %v953 = vshrl.u32 %v952, 7
        %v954 = vsub.s32 %v951, %v953
        %v955 = vrot.slane %v941, %v954
        %v956 = vcombine.low %v900, %v916
        %v957 = vcombine.high %v900, %v916
        %v959 = vunpack.c.l.s4 1934713408
        %v960 = vunpack.c.0.s8 %v959
        %v961 = vlaneseq
        %v962 = vshrl.u32 %v961, 7
        %v963 = vsub.s32 %v960, %v962
        %v964 = vrot.slane %v956, %v963
        %v966 = vunpack.c.l.s4 1934713408
        %v967 = vunpack.c.0.s8 %v966
        %v968 = vlaneseq
        %v969 = vshrl.u32 %v968, 7
        %v970 = vsub.s32 %v967, %v969
        %v971 = vrot.slane %v957, %v970
        %v972 = vcombine.low %v907, %v923
        %v973 = vcombine.high %v907, %v923
        %v975 = vunpack.c.l.s4 1934713408
        %v976 = vunpack.c.0.s8 %v975
        %v977 = vlaneseq
        %v978 = vshrl.u32 %v977, 7
        %v979 = vsub.s32 %v976, %v978
        %v980 = vrot.slane %v972, %v979
        %v982 = vunpack.c.l.s4 1934713408
        %v983 = vunpack.c.0.s8 %v982
        %v984 = vlaneseq
        %v985 = vshrl.u32 %v984, 7
        %v986 = vsub.s32 %v983, %v985
        %v987 = vrot.slane %v973, %v986
        %v988 = vcombine.low %v932, %v948
        %v989 = vcombine.high %v932, %v948
        %v991 = vunpack.c.l.s4 1934713408
        %v992 = vunpack.c.0.s8 %v991
        %v993 = vlaneseq
        %v994 = vshrl.u32 %v993, 7
        %v995 = vsub.s32 %v992, %v994
        %v996 = vrot.slane %v988, %v995
        %v998 = vunpack.c.l.s4 1934713408
        %v999 = vunpack.c.0.s8 %v998
        %v1000 = vlaneseq
        %v1001 = vshrl.u32 %v1000, 7
        %v1002 = vsub.s32 %v999, %v1001
        %v1003 = vrot.slane %v989, %v1002
        %v1004 = vcombine.low %v939, %v955
        %v1005 = vcombine.high %v939, %v955
        %v1007 = vunpack.c.l.s4 1934713408
        %v1008 = vunpack.c.0.s8 %v1007
        %v1009 = vlaneseq
        %v1010 = vshrl.u32 %v1009, 7
        %v1011 = vsub.s32 %v1008, %v1010
        %v1012 = vrot.slane %v1004, %v1011
        %v1014 = vunpack.c.l.s4 1934713408
        %v1015 = vunpack.c.0.s8 %v1014
        %v1016 = vlaneseq
        %v1017 = vshrl.u32 %v1016, 7
        %v1018 = vsub.s32 %v1015, %v1017
        %v1019 = vrot.slane %v1005, %v1018
        %v1020 = vcombine.low %v964, %v996
        %v1021 = vcombine.high %v964, %v996
        %v1022 = vcombine.low %v971, %v1003
        %v1023 = vcombine.high %v971, %v1003
        %v1024 = vcombine.low %v980, %v1012
        %v1025 = vcombine.high %v980, %v1012
        %v1026 = vcombine.low %v987, %v1019
        %v1027 = vcombine.high %v987, %v1019
        %v1028 = vcombine.low %v357, %v365
        %v1029 = vcombine.high %v357, %v365
        %v1031 = vunpack.c.l.s4 1983009808
        %v1032 = vunpack.c.0.s8 %v1031
        %v1033 = vlaneseq
        %v1034 = vshrl.u32 %v1033, 7
        %v1035 = vsub.s32 %v1032, %v1034
        %v1036 = vrot.slane %v1028, %v1035
        %v1038 = vunpack.c.l.s4 1983009808
        %v1039 = vunpack.c.0.s8 %v1038
        %v1040 = vlaneseq
        %v1041 = vshrl.u32 %v1040, 7
        %v1042 = vsub.s32 %v1039, %v1041
        %v1043 = vrot.slane %v1029, %v1042
        %v1044 = vcombine.low %v361, %v369
        %v1045 = vcombine.high %v361, %v369
        %v1047 = vunpack.c.l.s4 1983009808
        %v1048 = vunpack.c.0.s8 %v1047
        %v1049 = vlaneseq
        %v1050 = vshrl.u32 %v1049, 7
        %v1051 = vsub.s32 %v1048, %v1050
        %v1052 = vrot.slane %v1044, %v1051
        %v1054 = vunpack.c.l.s4 1983009808
        %v1055 = vunpack.c.0.s8 %v1054
        %v1056 = vlaneseq
        %v1057 = vshrl.u32 %v1056, 7
        %v1058 = vsub.s32 %v1055, %v1057
        %v1059 = vrot.slane %v1045, %v1058
        %v1060 = vcombine.low %v373, %v381
        %v1061 = vcombine.high %v373, %v381
        %v1063 = vunpack.c.l.s4 1983009808
        %v1064 = vunpack.c.0.s8 %v1063
        %v1065 = vlaneseq
        %v1066 = vshrl.u32 %v1065, 7
        %v1067 = vsub.s32 %v1064, %v1066
        %v1068 = vrot.slane %v1060, %v1067
        %v1070 = vunpack.c.l.s4 1983009808
        %v1071 = vunpack.c.0.s8 %v1070
        %v1072 = vlaneseq
        %v1073 = vshrl.u32 %v1072, 7
        %v1074 = vsub.s32 %v1071, %v1073
        %v1075 = vrot.slane %v1061, %v1074
        %v1076 = vcombine.low %v377, %v385
        %v1077 = vcombine.high %v377, %v385
        %v1079 = vunpack.c.l.s4 1983009808
        %v1080 = vunpack.c.0.s8 %v1079
        %v1081 = vlaneseq
        %v1082 = vshrl.u32 %v1081, 7
        %v1083 = vsub.s32 %v1080, %v1082
        %v1084 = vrot.slane %v1076, %v1083
        %v1086 = vunpack.c.l.s4 1983009808
        %v1087 = vunpack.c.0.s8 %v1086
        %v1088 = vlaneseq
        %v1089 = vshrl.u32 %v1088, 7
        %v1090 = vsub.s32 %v1087, %v1089
        %v1091 = vrot.slane %v1077, %v1090
        %v1092 = vcombine.low %v1036, %v1052
        %v1093 = vcombine.high %v1036, %v1052
        %v1095 = vunpack.c.l.s4 1934713408
        %v1096 = vunpack.c.0.s8 %v1095
        %v1097 = vlaneseq
        %v1098 = vshrl.u32 %v1097, 7
        %v1099 = vsub.s32 %v1096, %v1098
        %v1100 = vrot.slane %v1092, %v1099
        %v1102 = vunpack.c.l.s4 1934713408
        %v1103 = vunpack.c.0.s8 %v1102
        %v1104 = vlaneseq
        %v1105 = vshrl.u32 %v1104, 7
        %v1106 = vsub.s32 %v1103, %v1105
        %v1107 = vrot.slane %v1093, %v1106
        %v1108 = vcombine.low %v1043, %v1059
        %v1109 = vcombine.high %v1043, %v1059
        %v1111 = vunpack.c.l.s4 1934713408
        %v1112 = vunpack.c.0.s8 %v1111
        %v1113 = vlaneseq
        %v1114 = vshrl.u32 %v1113, 7
        %v1115 = vsub.s32 %v1112, %v1114
        %v1116 = vrot.slane %v1108, %v1115
        %v1118 = vunpack.c.l.s4 1934713408
        %v1119 = vunpack.c.0.s8 %v1118
        %v1120 = vlaneseq
        %v1121 = vshrl.u32 %v1120, 7
        %v1122 = vsub.s32 %v1119, %v1121
        %v1123 = vrot.slane %v1109, %v1122
        %v1124 = vcombine.low %v1068, %v1084
        %v1125 = vcombine.high %v1068, %v1084
        %v1127 = vunpack.c.l.s4 1934713408
        %v1128 = vunpack.c.0.s8 %v1127
        %v1129 = vlaneseq
        %v1130 = vshrl.u32 %v1129, 7
        %v1131 = vsub.s32 %v1128, %v1130
        %v1132 = vrot.slane %v1124, %v1131
        %v1134 = vunpack.c.l.s4 1934713408
        %v1135 = vunpack.c.0.s8 %v1134
        %v1136 = vlaneseq
        %v1137 = vshrl.u32 %v1136, 7
        %v1138 = vsub.s32 %v1135, %v1137
        %v1139 = vrot.slane %v1125, %v1138
        %v1140 = vcombine.low %v1075, %v1091
        %v1141 = vcombine.high %v1075, %v1091
        %v1143 = vunpack.c.l.s4 1934713408
        %v1144 = vunpack.c.0.s8 %v1143
        %v1145 = vlaneseq
        %v1146 = vshrl.u32 %v1145, 7
        %v1147 = vsub.s32 %v1144, %v1146
        %v1148 = vrot.slane %v1140, %v1147
        %v1150 = vunpack.c.l.s4 1934713408
        %v1151 = vunpack.c.0.s8 %v1150
        %v1152 = vlaneseq
        %v1153 = vshrl.u32 %v1152, 7
        %v1154 = vsub.s32 %v1151, %v1153
        %v1155 = vrot.slane %v1141, %v1154
        %v1156 = vcombine.low %v1100, %v1132
        %v1157 = vcombine.high %v1100, %v1132
        %v1158 = vcombine.low %v1107, %v1139
        %v1159 = vcombine.high %v1107, %v1139
        %v1160 = vcombine.low %v1116, %v1148
        %v1161 = vcombine.high %v1116, %v1148
        %v1162 = vcombine.low %v1123, %v1155
        %v1163 = vcombine.high %v1123, %v1155
        %v1164 = vcombine.low %v389, %v397
        %v1165 = vcombine.high %v389, %v397
        %v1167 = vunpack.c.l.s4 1983009808
        %v1168 = vunpack.c.0.s8 %v1167
        %v1169 = vlaneseq
        %v1170 = vshrl.u32 %v1169, 7
        %v1171 = vsub.s32 %v1168, %v1170
        %v1172 = vrot.slane %v1164, %v1171
        %v1174 = vunpack.c.l.s4 1983009808
        %v1175 = vunpack.c.0.s8 %v1174
        %v1176 = vlaneseq
        %v1177 = vshrl.u32 %v1176, 7
        %v1178 = vsub.s32 %v1175, %v1177
        %v1179 = vrot.slane %v1165, %v1178
        %v1180 = vcombine.low %v393, %v401
        %v1181 = vcombine.high %v393, %v401
        %v1183 = vunpack.c.l.s4 1983009808
        %v1184 = vunpack.c.0.s8 %v1183
        %v1185 = vlaneseq
        %v1186 = vshrl.u32 %v1185, 7
        %v1187 = vsub.s32 %v1184, %v1186
        %v1188 = vrot.slane %v1180, %v1187
        %v1190 = vunpack.c.l.s4 1983009808
        %v1191 = vunpack.c.0.s8 %v1190
        %v1192 = vlaneseq
        %v1193 = vshrl.u32 %v1192, 7
        %v1194 = vsub.s32 %v1191, %v1193
        %v1195 = vrot.slane %v1181, %v1194
        %v1196 = vcombine.low %v405, %v413
        %v1197 = vcombine.high %v405, %v413
        %v1199 = vunpack.c.l.s4 1983009808
        %v1200 = vunpack.c.0.s8 %v1199
        %v1201 = vlaneseq
        %v1202 = vshrl.u32 %v1201, 7
        %v1203 = vsub.s32 %v1200, %v1202
        %v1204 = vrot.slane %v1196, %v1203
        %v1206 = vunpack.c.l.s4 1983009808
        %v1207 = vunpack.c.0.s8 %v1206
        %v1208 = vlaneseq
        %v1209 = vshrl.u32 %v1208, 7
        %v1210 = vsub.s32 %v1207, %v1209
        %v1211 = vrot.slane %v1197, %v1210
        %v1212 = vcombine.low %v409, %v417
        %v1213 = vcombine.high %v409, %v417
        %v1215 = vunpack.c.l.s4 1983009808
        %v1216 = vunpack.c.0.s8 %v1215
        %v1217 = vlaneseq
        %v1218 = vshrl.u32 %v1217, 7
        %v1219 = vsub.s32 %v1216, %v1218
        %v1220 = vrot.slane %v1212, %v1219
        %v1222 = vunpack.c.l.s4 1983009808
        %v1223 = vunpack.c.0.s8 %v1222
        %v1224 = vlaneseq
        %v1225 = vshrl.u32 %v1224, 7
        %v1226 = vsub.s32 %v1223, %v1225
        %v1227 = vrot.slane %v1213, %v1226
        %v1228 = vcombine.low %v1172, %v1188
        %v1229 = vcombine.high %v1172, %v1188
        %v1231 = vunpack.c.l.s4 1934713408
        %v1232 = vunpack.c.0.s8 %v1231
        %v1233 = vlaneseq
        %v1234 = vshrl.u32 %v1233, 7
        %v1235 = vsub.s32 %v1232, %v1234
        %v1236 = vrot.slane %v1228, %v1235
        %v1238 = vunpack.c.l.s4 1934713408
        %v1239 = vunpack.c.0.s8 %v1238
        %v1240 = vlaneseq
        %v1241 = vshrl.u32 %v1240, 7
        %v1242 = vsub.s32 %v1239, %v1241
        %v1243 = vrot.slane %v1229, %v1242
        %v1244 = vcombine.low %v1179, %v1195
        %v1245 = vcombine.high %v1179, %v1195
        %v1247 = vunpack.c.l.s4 1934713408
        %v1248 = vunpack.c.0.s8 %v1247
        %v1249 = vlaneseq
        %v1250 = vshrl.u32 %v1249, 7
        %v1251 = vsub.s32 %v1248, %v1250
        %v1252 = vrot.slane %v1244, %v1251
        %v1254 = vunpack.c.l.s4 1934713408
        %v1255 = vunpack.c.0.s8 %v1254
        %v1256 = vlaneseq
        %v1257 = vshrl.u32 %v1256, 7
        %v1258 = vsub.s32 %v1255, %v1257
        %v1259 = vrot.slane %v1245, %v1258
        %v1260 = vcombine.low %v1204, %v1220
        %v1261 = vcombine.high %v1204, %v1220
        %v1263 = vunpack.c.l.s4 1934713408
        %v1264 = vunpack.c.0.s8 %v1263
        %v1265 = vlaneseq
        %v1266 = vshrl.u32 %v1265, 7
        %v1267 = vsub.s32 %v1264, %v1266
        %v1268 = vrot.slane %v1260, %v1267
        %v1270 = vunpack.c.l.s4 1934713408
        %v1271 = vunpack.c.0.s8 %v1270
        %v1272 = vlaneseq
        %v1273 = vshrl.u32 %v1272, 7
        %v1274 = vsub.s32 %v1271, %v1273
        %v1275 = vrot.slane %v1261, %v1274
        %v1276 = vcombine.low %v1211, %v1227
        %v1277 = vcombine.high %v1211, %v1227
        %v1279 = vunpack.c.l.s4 1934713408
        %v1280 = vunpack.c.0.s8 %v1279
        %v1281 = vlaneseq
        %v1282 = vshrl.u32 %v1281, 7
        %v1283 = vsub.s32 %v1280, %v1282
        %v1284 = vrot.slane %v1276, %v1283
        %v1286 = vunpack.c.l.s4 1934713408
        %v1287 = vunpack.c.0.s8 %v1286
        %v1288 = vlaneseq
        %v1289 = vshrl.u32 %v1288, 7
        %v1290 = vsub.s32 %v1287, %v1289
        %v1291 = vrot.slane %v1277, %v1290
        %v1292 = vcombine.low %v1236, %v1268
        %v1293 = vcombine.high %v1236, %v1268
        %v1294 = vcombine.low %v1243, %v1275
        %v1295 = vcombine.high %v1243, %v1275
        %v1296 = vcombine.low %v1252, %v1284
        %v1297 = vcombine.high %v1252, %v1284
        %v1298 = vcombine.low %v1259, %v1291
        %v1299 = vcombine.high %v1259, %v1291
        %v1300 = vcombine.low %v421, %v429
        %v1301 = vcombine.high %v421, %v429
        %v1303 = vunpack.c.l.s4 1983009808
        %v1304 = vunpack.c.0.s8 %v1303
        %v1305 = vlaneseq
        %v1306 = vshrl.u32 %v1305, 7
        %v1307 = vsub.s32 %v1304, %v1306
        %v1308 = vrot.slane %v1300, %v1307
        %v1310 = vunpack.c.l.s4 1983009808
        %v1311 = vunpack.c.0.s8 %v1310
        %v1312 = vlaneseq
        %v1313 = vshrl.u32 %v1312, 7
        %v1314 = vsub.s32 %v1311, %v1313
        %v1315 = vrot.slane %v1301, %v1314
        %v1316 = vcombine.low %v425, %v433
        %v1317 = vcombine.high %v425, %v433
        %v1319 = vunpack.c.l.s4 1983009808
        %v1320 = vunpack.c.0.s8 %v1319
        %v1321 = vlaneseq
        %v1322 = vshrl.u32 %v1321, 7
        %v1323 = vsub.s32 %v1320, %v1322
        %v1324 = vrot.slane %v1316, %v1323
        %v1326 = vunpack.c.l.s4 1983009808
        %v1327 = vunpack.c.0.s8 %v1326
        %v1328 = vlaneseq
        %v1329 = vshrl.u32 %v1328, 7
        %v1330 = vsub.s32 %v1327, %v1329
        %v1331 = vrot.slane %v1317, %v1330
        %v1332 = vcombine.low %v437, %v445
        %v1333 = vcombine.high %v437, %v445
        %v1335 = vunpack.c.l.s4 1983009808
        %v1336 = vunpack.c.0.s8 %v1335
        %v1337 = vlaneseq
        %v1338 = vshrl.u32 %v1337, 7
        %v1339 = vsub.s32 %v1336, %v1338
        %v1340 = vrot.slane %v1332, %v1339
        %v1342 = vunpack.c.l.s4 1983009808
        %v1343 = vunpack.c.0.s8 %v1342
        %v1344 = vlaneseq
        %v1345 = vshrl.u32 %v1344, 7
        %v1346 = vsub.s32 %v1343, %v1345
        %v1347 = vrot.slane %v1333, %v1346
        %v1348 = vcombine.low %v441, %v449
        %v1349 = vcombine.high %v441, %v449
        %v1351 = vunpack.c.l.s4 1983009808
        %v1352 = vunpack.c.0.s8 %v1351
        %v1353 = vlaneseq
        %v1354 = vshrl.u32 %v1353, 7
        %v1355 = vsub.s32 %v1352, %v1354
        %v1356 = vrot.slane %v1348, %v1355
        %v1358 = vunpack.c.l.s4 1983009808
        %v1359 = vunpack.c.0.s8 %v1358
        %v1360 = vlaneseq
        %v1361 = vshrl.u32 %v1360, 7
        %v1362 = vsub.s32 %v1359, %v1361
        %v1363 = vrot.slane %v1349, %v1362
        %v1364 = vcombine.low %v1308, %v1324
        %v1365 = vcombine.high %v1308, %v1324
        %v1367 = vunpack.c.l.s4 1934713408
        %v1368 = vunpack.c.0.s8 %v1367
        %v1369 = vlaneseq
        %v1370 = vshrl.u32 %v1369, 7
        %v1371 = vsub.s32 %v1368, %v1370
        %v1372 = vrot.slane %v1364, %v1371
        %v1374 = vunpack.c.l.s4 1934713408
        %v1375 = vunpack.c.0.s8 %v1374
        %v1376 = vlaneseq
        %v1377 = vshrl.u32 %v1376, 7
        %v1378 = vsub.s32 %v1375, %v1377
        %v1379 = vrot.slane %v1365, %v1378
        %v1380 = vcombine.low %v1315, %v1331
        %v1381 = vcombine.high %v1315, %v1331
        %v1383 = vunpack.c.l.s4 1934713408
        %v1384 = vunpack.c.0.s8 %v1383
        %v1385 = vlaneseq
        %v1386 = vshrl.u32 %v1385, 7
        %v1387 = vsub.s32 %v1384, %v1386
        %v1388 = vrot.slane %v1380, %v1387
        %v1390 = vunpack.c.l.s4 1934713408
        %v1391 = vunpack.c.0.s8 %v1390
        %v1392 = vlaneseq
        %v1393 = vshrl.u32 %v1392, 7
        %v1394 = vsub.s32 %v1391, %v1393
        %v1395 = vrot.slane %v1381, %v1394
        %v1396 = vcombine.low %v1340, %v1356
        %v1397 = vcombine.high %v1340, %v1356
        %v1399 = vunpack.c.l.s4 1934713408
        %v1400 = vunpack.c.0.s8 %v1399
        %v1401 = vlaneseq
        %v1402 = vshrl.u32 %v1401, 7
        %v1403 = vsub.s32 %v1400, %v1402
        %v1404 = vrot.slane %v1396, %v1403
        %v1406 = vunpack.c.l.s4 1934713408
        %v1407 = vunpack.c.0.s8 %v1406
        %v1408 = vlaneseq
        %v1409 = vshrl.u32 %v1408, 7
        %v1410 = vsub.s32 %v1407, %v1409
        %v1411 = vrot.slane %v1397, %v1410
        %v1412 = vcombine.low %v1347, %v1363
        %v1413 = vcombine.high %v1347, %v1363
        %v1415 = vunpack.c.l.s4 1934713408
        %v1416 = vunpack.c.0.s8 %v1415
        %v1417 = vlaneseq
        %v1418 = vshrl.u32 %v1417, 7
        %v1419 = vsub.s32 %v1416, %v1418
        %v1420 = vrot.slane %v1412, %v1419
        %v1422 = vunpack.c.l.s4 1934713408
        %v1423 = vunpack.c.0.s8 %v1422
        %v1424 = vlaneseq
        %v1425 = vshrl.u32 %v1424, 7
        %v1426 = vsub.s32 %v1423, %v1425
        %v1427 = vrot.slane %v1413, %v1426
        %v1428 = vcombine.low %v1372, %v1404
        %v1429 = vcombine.high %v1372, %v1404
        %v1430 = vcombine.low %v1379, %v1411
        %v1431 = vcombine.high %v1379, %v1411
        %v1432 = vcombine.low %v1388, %v1420
        %v1433 = vcombine.high %v1388, %v1420
        %v1434 = vcombine.low %v1395, %v1427
        %v1435 = vcombine.high %v1395, %v1427
        %v1436 = vcombine.low %v453, %v461
        %v1437 = vcombine.high %v453, %v461
        %v1439 = vunpack.c.l.s4 1983009808
        %v1440 = vunpack.c.0.s8 %v1439
        %v1441 = vlaneseq
        %v1442 = vshrl.u32 %v1441, 7
        %v1443 = vsub.s32 %v1440, %v1442
        %v1444 = vrot.slane %v1436, %v1443
        %v1446 = vunpack.c.l.s4 1983009808
        %v1447 = vunpack.c.0.s8 %v1446
        %v1448 = vlaneseq
        %v1449 = vshrl.u32 %v1448, 7
        %v1450 = vsub.s32 %v1447, %v1449
        %v1451 = vrot.slane %v1437, %v1450
        %v1452 = vcombine.low %v457, %v465
        %v1453 = vcombine.high %v457, %v465
        %v1455 = vunpack.c.l.s4 1983009808
        %v1456 = vunpack.c.0.s8 %v1455
        %v1457 = vlaneseq
        %v1458 = vshrl.u32 %v1457, 7
        %v1459 = vsub.s32 %v1456, %v1458
        %v1460 = vrot.slane %v1452, %v1459
        %v1462 = vunpack.c.l.s4 1983009808
        %v1463 = vunpack.c.0.s8 %v1462
        %v1464 = vlaneseq
        %v1465 = vshrl.u32 %v1464, 7
        %v1466 = vsub.s32 %v1463, %v1465
        %v1467 = vrot.slane %v1453, %v1466
        %v1468 = vcombine.low %v469, %v477
        %v1469 = vcombine.high %v469, %v477
        %v1471 = vunpack.c.l.s4 1983009808
        %v1472 = vunpack.c.0.s8 %v1471
        %v1473 = vlaneseq
        %v1474 = vshrl.u32 %v1473, 7
        %v1475 = vsub.s32 %v1472, %v1474
        %v1476 = vrot.slane %v1468, %v1475
        %v1478 = vunpack.c.l.s4 1983009808
        %v1479 = vunpack.c.0.s8 %v1478
        %v1480 = vlaneseq
        %v1481 = vshrl.u32 %v1480, 7
        %v1482 = vsub.s32 %v1479, %v1481
        %v1483 = vrot.slane %v1469, %v1482
        %v1484 = vcombine.low %v473, %v481
        %v1485 = vcombine.high %v473, %v481
        %v1487 = vunpack.c.l.s4 1983009808
        %v1488 = vunpack.c.0.s8 %v1487
        %v1489 = vlaneseq
        %v1490 = vshrl.u32 %v1489, 7
        %v1491 = vsub.s32 %v1488, %v1490
        %v1492 = vrot.slane %v1484, %v1491
        %v1494 = vunpack.c.l.s4 1983009808
        %v1495 = vunpack.c.0.s8 %v1494
        %v1496 = vlaneseq
        %v1497 = vshrl.u32 %v1496, 7
        %v1498 = vsub.s32 %v1495, %v1497
        %v1499 = vrot.slane %v1485, %v1498
        %v1500 = vcombine.low %v1444, %v1460
        %v1501 = vcombine.high %v1444, %v1460
        %v1503 = vunpack.c.l.s4 1934713408
        %v1504 = vunpack.c.0.s8 %v1503
        %v1505 = vlaneseq
        %v1506 = vshrl.u32 %v1505, 7
        %v1507 = vsub.s32 %v1504, %v1506
        %v1508 = vrot.slane %v1500, %v1507
        %v1510 = vunpack.c.l.s4 1934713408
        %v1511 = vunpack.c.0.s8 %v1510
        %v1512 = vlaneseq
        %v1513 = vshrl.u32 %v1512, 7
        %v1514 = vsub.s32 %v1511, %v1513
        %v1515 = vrot.slane %v1501, %v1514
        %v1516 = vcombine.low %v1451, %v1467
        %v1517 = vcombine.high %v1451, %v1467
        %v1519 = vunpack.c.l.s4 1934713408
        %v1520 = vunpack.c.0.s8 %v1519
        %v1521 = vlaneseq
        %v1522 = vshrl.u32 %v1521, 7
        %v1523 = vsub.s32 %v1520, %v1522
        %v1524 = vrot.slane %v1516, %v1523
        %v1526 = vunpack.c.l.s4 1934713408
        %v1527 = vunpack.c.0.s8 %v1526
        %v1528 = vlaneseq
        %v1529 = vshrl.u32 %v1528, 7
        %v1530 = vsub.s32 %v1527, %v1529
        %v1531 = vrot.slane %v1517, %v1530
        %v1532 = vcombine.low %v1476, %v1492
        %v1533 = vcombine.high %v1476, %v1492
        %v1535 = vunpack.c.l.s4 1934713408
        %v1536 = vunpack.c.0.s8 %v1535
        %v1537 = vlaneseq
        %v1538 = vshrl.u32 %v1537, 7
        %v1539 = vsub.s32 %v1536, %v1538
        %v1540 = vrot.slane %v1532, %v1539
        %v1542 = vunpack.c.l.s4 1934713408
        %v1543 = vunpack.c.0.s8 %v1542
        %v1544 = vlaneseq
        %v1545 = vshrl.u32 %v1544, 7
        %v1546 = vsub.s32 %v1543, %v1545
        %v1547 = vrot.slane %v1533, %v1546
        %v1548 = vcombine.low %v1483, %v1499
        %v1549 = vcombine.high %v1483, %v1499
        %v1551 = vunpack.c.l.s4 1934713408
        %v1552 = vunpack.c.0.s8 %v1551
        %v1553 = vlaneseq
        %v1554 = vshrl.u32 %v1553, 7
        %v1555 = vsub.s32 %v1552, %v1554
        %v1556 = vrot.slane %v1548, %v1555
        %v1558 = vunpack.c.l.s4 1934713408
        %v1559 = vunpack.c.0.s8 %v1558
        %v1560 = vlaneseq
        %v1561 = vshrl.u32 %v1560, 7
        %v1562 = vsub.s32 %v1559, %v1561
        %v1563 = vrot.slane %v1549, %v1562
        %v1564 = vcombine.low %v1508, %v1540
        %v1565 = vcombine.high %v1508, %v1540
        %v1566 = vcombine.low %v1515, %v1547
        %v1567 = vcombine.high %v1515, %v1547
        %v1568 = vcombine.low %v1524, %v1556
        %v1569 = vcombine.high %v1524, %v1556
        %v1570 = vcombine.low %v1531, %v1563
        %v1571 = vcombine.high %v1531, %v1563
        %v1572 = vcombine.low %v358, %v366
        %v1573 = vcombine.high %v358, %v366
        %v1575 = vunpack.c.l.s4 1983009808
        %v1576 = vunpack.c.0.s8 %v1575
        %v1577 = vlaneseq
        %v1578 = vshrl.u32 %v1577, 7
        %v1579 = vsub.s32 %v1576, %v1578
        %v1580 = vrot.slane %v1572, %v1579
        %v1582 = vunpack.c.l.s4 1983009808
        %v1583 = vunpack.c.0.s8 %v1582
        %v1584 = vlaneseq
        %v1585 = vshrl.u32 %v1584, 7
        %v1586 = vsub.s32 %v1583, %v1585
        %v1587 = vrot.slane %v1573, %v1586
        %v1588 = vcombine.low %v362, %v370
        %v1589 = vcombine.high %v362, %v370
        %v1591 = vunpack.c.l.s4 1983009808
        %v1592 = vunpack.c.0.s8 %v1591
        %v1593 = vlaneseq
        %v1594 = vshrl.u32 %v1593, 7
        %v1595 = vsub.s32 %v1592, %v1594
        %v1596 = vrot.slane %v1588, %v1595
        %v1598 = vunpack.c.l.s4 1983009808
        %v1599 = vunpack.c.0.s8 %v1598
        %v1600 = vlaneseq
        %v1601 = vshrl.u32 %v1600, 7
        %v1602 = vsub.s32 %v1599, %v1601
        %v1603 = vrot.slane %v1589, %v1602
        %v1604 = vcombine.low %v374, %v382
        %v1605 = vcombine.high %v374, %v382
        %v1607 = vunpack.c.l.s4 1983009808
        %v1608 = vunpack.c.0.s8 %v1607
        %v1609 = vlaneseq
        %v1610 = vshrl.u32 %v1609, 7
        %v1611 = vsub.s32 %v1608, %v1610
        %v1612 = vrot.slane %v1604, %v1611
        %v1614 = vunpack.c.l.s4 1983009808
        %v1615 = vunpack.c.0.s8 %v1614
        %v1616 = vlaneseq
        %v1617 = vshrl.u32 %v1616, 7
        %v1618 = vsub.s32 %v1615, %v1617
        %v1619 = vrot.slane %v1605, %v1618
        %v1620 = vcombine.low %v378, %v386
        %v1621 = vcombine.high %v378, %v386
        %v1623 = vunpack.c.l.s4 1983009808
        %v1624 = vunpack.c.0.s8 %v1623
        %v1625 = vlaneseq
        %v1626 = vshrl.u32 %v1625, 7
        %v1627 = vsub.s32 %v1624, %v1626
        %v1628 = vrot.slane %v1620, %v1627
        %v1630 = vunpack.c.l.s4 1983009808
        %v1631 = vunpack.c.0.s8 %v1630
        %v1632 = vlaneseq
        %v1633 = vshrl.u32 %v1632, 7
        %v1634 = vsub.s32 %v1631, %v1633
        %v1635 = vrot.slane %v1621, %v1634
        %v1636 = vcombine.low %v1580, %v1596
        %v1637 = vcombine.high %v1580, %v1596
        %v1639 = vunpack.c.l.s4 1934713408
        %v1640 = vunpack.c.0.s8 %v1639
        %v1641 = vlaneseq
        %v1642 = vshrl.u32 %v1641, 7
        %v1643 = vsub.s32 %v1640, %v1642
        %v1644 = vrot.slane %v1636, %v1643
        %v1646 = vunpack.c.l.s4 1934713408
        %v1647 = vunpack.c.0.s8 %v1646
        %v1648 = vlaneseq
        %v1649 = vshrl.u32 %v1648, 7
        %v1650 = vsub.s32 %v1647, %v1649
        %v1651 = vrot.slane %v1637, %v1650
        %v1652 = vcombine.low %v1587, %v1603
        %v1653 = vcombine.high %v1587, %v1603
        %v1655 = vunpack.c.l.s4 1934713408
        %v1656 = vunpack.c.0.s8 %v1655
        %v1657 = vlaneseq
        %v1658 = vshrl.u32 %v1657, 7
        %v1659 = vsub.s32 %v1656, %v1658
        %v1660 = vrot.slane %v1652, %v1659
        %v1662 = vunpack.c.l.s4 1934713408
        %v1663 = vunpack.c.0.s8 %v1662
        %v1664 = vlaneseq
        %v1665 = vshrl.u32 %v1664, 7
        %v1666 = vsub.s32 %v1663, %v1665
        %v1667 = vrot.slane %v1653, %v1666
        %v1668 = vcombine.low %v1612, %v1628
        %v1669 = vcombine.high %v1612, %v1628
        %v1671 = vunpack.c.l.s4 1934713408
        %v1672 = vunpack.c.0.s8 %v1671
        %v1673 = vlaneseq
        %v1674 = vshrl.u32 %v1673, 7
        %v1675 = vsub.s32 %v1672, %v1674
        %v1676 = vrot.slane %v1668, %v1675
        %v1678 = vunpack.c.l.s4 1934713408
        %v1679 = vunpack.c.0.s8 %v1678
        %v1680 = vlaneseq
        %v1681 = vshrl.u32 %v1680, 7
        %v1682 = vsub.s32 %v1679, %v1681
        %v1683 = vrot.slane %v1669, %v1682
        %v1684 = vcombine.low %v1619, %v1635
        %v1685 = vcombine.high %v1619, %v1635
        %v1687 = vunpack.c.l.s4 1934713408
        %v1688 = vunpack.c.0.s8 %v1687
        %v1689 = vlaneseq
        %v1690 = vshrl.u32 %v1689, 7
        %v1691 = vsub.s32 %v1688, %v1690
        %v1692 = vrot.slane %v1684, %v1691
        %v1694 = vunpack.c.l.s4 1934713408
        %v1695 = vunpack.c.0.s8 %v1694
        %v1696 = vlaneseq
        %v1697 = vshrl.u32 %v1696, 7
        %v1698 = vsub.s32 %v1695, %v1697
        %v1699 = vrot.slane %v1685, %v1698
        %v1700 = vcombine.low %v1644, %v1676
        %v1701 = vcombine.high %v1644, %v1676
        %v1702 = vcombine.low %v1651, %v1683
        %v1703 = vcombine.high %v1651, %v1683
        %v1704 = vcombine.low %v1660, %v1692
        %v1705 = vcombine.high %v1660, %v1692
        %v1706 = vcombine.low %v1667, %v1699
        %v1707 = vcombine.high %v1667, %v1699
        %v1708 = vcombine.low %v390, %v398
        %v1709 = vcombine.high %v390, %v398
        %v1711 = vunpack.c.l.s4 1983009808
        %v1712 = vunpack.c.0.s8 %v1711
        %v1713 = vlaneseq
        %v1714 = vshrl.u32 %v1713, 7
        %v1715 = vsub.s32 %v1712, %v1714
        %v1716 = vrot.slane %v1708, %v1715
        %v1718 = vunpack.c.l.s4 1983009808
        %v1719 = vunpack.c.0.s8 %v1718
        %v1720 = vlaneseq
        %v1721 = vshrl.u32 %v1720, 7
        %v1722 = vsub.s32 %v1719, %v1721
        %v1723 = vrot.slane %v1709, %v1722
        %v1724 = vcombine.low %v394, %v402
        %v1725 = vcombine.high %v394, %v402
        %v1727 = vunpack.c.l.s4 1983009808
        %v1728 = vunpack.c.0.s8 %v1727
        %v1729 = vlaneseq
        %v1730 = vshrl.u32 %v1729, 7
        %v1731 = vsub.s32 %v1728, %v1730
        %v1732 = vrot.slane %v1724, %v1731
        %v1734 = vunpack.c.l.s4 1983009808
        %v1735 = vunpack.c.0.s8 %v1734
        %v1736 = vlaneseq
        %v1737 = vshrl.u32 %v1736, 7
        %v1738 = vsub.s32 %v1735, %v1737
        %v1739 = vrot.slane %v1725, %v1738
        %v1740 = vcombine.low %v406, %v414
        %v1741 = vcombine.high %v406, %v414
        %v1743 = vunpack.c.l.s4 1983009808
        %v1744 = vunpack.c.0.s8 %v1743
        %v1745 = vlaneseq
        %v1746 = vshrl.u32 %v1745, 7
        %v1747 = vsub.s32 %v1744, %v1746
        %v1748 = vrot.slane %v1740, %v1747
        %v1750 = vunpack.c.l.s4 1983009808
        %v1751 = vunpack.c.0.s8 %v1750
        %v1752 = vlaneseq
        %v1753 = vshrl.u32 %v1752, 7
        %v1754 = vsub.s32 %v1751, %v1753
        %v1755 = vrot.slane %v1741, %v1754
        %v1756 = vcombine.low %v410, %v418
        %v1757 = vcombine.high %v410, %v418
        %v1759 = vunpack.c.l.s4 1983009808
        %v1760 = vunpack.c.0.s8 %v1759
        %v1761 = vlaneseq
        %v1762 = vshrl.u32 %v1761, 7
        %v1763 = vsub.s32 %v1760, %v1762
        %v1764 = vrot.slane %v1756, %v1763
        %v1766 = vunpack.c.l.s4 1983009808
        %v1767 = vunpack.c.0.s8 %v1766
        %v1768 = vlaneseq
        %v1769 = vshrl.u32 %v1768, 7
        %v1770 = vsub.s32 %v1767, %v1769
        %v1771 = vrot.slane %v1757, %v1770
        %v1772 = vcombine.low %v1716, %v1732
        %v1773 = vcombine.high %v1716, %v1732
        %v1775 = vunpack.c.l.s4 1934713408
        %v1776 = vunpack.c.0.s8 %v1775
        %v1777 = vlaneseq
        %v1778 = vshrl.u32 %v1777, 7
        %v1779 = vsub.s32 %v1776, %v1778
        %v1780 = vrot.slane %v1772, %v1779
        %v1782 = vunpack.c.l.s4 1934713408
        %v1783 = vunpack.c.0.s8 %v1782
        %v1784 = vlaneseq
        %v1785 = vshrl.u32 %v1784, 7
        %v1786 = vsub.s32 %v1783, %v1785
        %v1787 = vrot.slane %v1773, %v1786
        %v1788 = vcombine.low %v1723, %v1739
        %v1789 = vcombine.high %v1723, %v1739
        %v1791 = vunpack.c.l.s4 1934713408
        %v1792 = vunpack.c.0.s8 %v1791
        %v1793 = vlaneseq
        %v1794 = vshrl.u32 %v1793, 7
        %v1795 = vsub.s32 %v1792, %v1794
        %v1796 = vrot.slane %v1788, %v1795
        %v1798 = vunpack.c.l.s4 1934713408
        %v1799 = vunpack.c.0.s8 %v1798
        %v1800 = vlaneseq
        %v1801 = vshrl.u32 %v1800, 7
        %v1802 = vsub.s32 %v1799, %v1801
        %v1803 = vrot.slane %v1789, %v1802
        %v1804 = vcombine.low %v1748, %v1764
        %v1805 = vcombine.high %v1748, %v1764
        %v1807 = vunpack.c.l.s4 1934713408
        %v1808 = vunpack.c.0.s8 %v1807
        %v1809 = vlaneseq
        %v1810 = vshrl.u32 %v1809, 7
        %v1811 = vsub.s32 %v1808, %v1810
        %v1812 = vrot.slane %v1804, %v1811
        %v1814 = vunpack.c.l.s4 1934713408
        %v1815 = vunpack.c.0.s8 %v1814
        %v1816 = vlaneseq
        %v1817 = vshrl.u32 %v1816, 7
        %v1818 = vsub.s32 %v1815, %v1817
        %v1819 = vrot.slane %v1805, %v1818
        %v1820 = vcombine.low %v1755, %v1771
        %v1821 = vcombine.high %v1755, %v1771
        %v1823 = vunpack.c.l.s4 1934713408
        %v1824 = vunpack.c.0.s8 %v1823
        %v1825 = vlaneseq
        %v1826 = vshrl.u32 %v1825, 7
        %v1827 = vsub.s32 %v1824, %v1826
        %v1828 = vrot.slane %v1820, %v1827
        %v1830 = vunpack.c.l.s4 1934713408
        %v1831 = vunpack.c.0.s8 %v1830
        %v1832 = vlaneseq
        %v1833 = vshrl.u32 %v1832, 7
        %v1834 = vsub.s32 %v1831, %v1833
        %v1835 = vrot.slane %v1821, %v1834
        %v1836 = vcombine.low %v1780, %v1812
        %v1837 = vcombine.high %v1780, %v1812
        %v1838 = vcombine.low %v1787, %v1819
        %v1839 = vcombine.high %v1787, %v1819
        %v1840 = vcombine.low %v1796, %v1828
        %v1841 = vcombine.high %v1796, %v1828
        %v1842 = vcombine.low %v1803, %v1835
        %v1843 = vcombine.high %v1803, %v1835
        %v1844 = vcombine.low %v422, %v430
        %v1845 = vcombine.high %v422, %v430
        %v1847 = vunpack.c.l.s4 1983009808
        %v1848 = vunpack.c.0.s8 %v1847
        %v1849 = vlaneseq
        %v1850 = vshrl.u32 %v1849, 7
        %v1851 = vsub.s32 %v1848, %v1850
        %v1852 = vrot.slane %v1844, %v1851
        %v1854 = vunpack.c.l.s4 1983009808
        %v1855 = vunpack.c.0.s8 %v1854
        %v1856 = vlaneseq
        %v1857 = vshrl.u32 %v1856, 7
        %v1858 = vsub.s32 %v1855, %v1857
        %v1859 = vrot.slane %v1845, %v1858
        %v1860 = vcombine.low %v426, %v434
        %v1861 = vcombine.high %v426, %v434
        %v1863 = vunpack.c.l.s4 1983009808
        %v1864 = vunpack.c.0.s8 %v1863
        %v1865 = vlaneseq
        %v1866 = vshrl.u32 %v1865, 7
        %v1867 = vsub.s32 %v1864, %v1866
        %v1868 = vrot.slane %v1860, %v1867
        %v1870 = vunpack.c.l.s4 1983009808
        %v1871 = vunpack.c.0.s8 %v1870
        %v1872 = vlaneseq
        %v1873 = vshrl.u32 %v1872, 7
        %v1874 = vsub.s32 %v1871, %v1873
        %v1875 = vrot.slane %v1861, %v1874
        %v1876 = vcombine.low %v438, %v446
        %v1877 = vcombine.high %v438, %v446
        %v1879 = vunpack.c.l.s4 1983009808
        %v1880 = vunpack.c.0.s8 %v1879
        %v1881 = vlaneseq
        %v1882 = vshrl.u32 %v1881, 7
        %v1883 = vsub.s32 %v1880, %v1882
        %v1884 = vrot.slane %v1876, %v1883
        %v1886 = vunpack.c.l.s4 1983009808
        %v1887 = vunpack.c.0.s8 %v1886
        %v1888 = vlaneseq
        %v1889 = vshrl.u32 %v1888, 7
        %v1890 = vsub.s32 %v1887, %v1889
        %v1891 = vrot.slane %v1877, %v1890
        %v1892 = vcombine.low %v442, %v450
        %v1893 = vcombine.high %v442, %v450
        %v1895 = vunpack.c.l.s4 1983009808
        %v1896 = vunpack.c.0.s8 %v1895
        %v1897 = vlaneseq
        %v1898 = vshrl.u32 %v1897, 7
        %v1899 = vsub.s32 %v1896, %v1898
        %v1900 = vrot.slane %v1892, %v1899
        %v1902 = vunpack.c.l.s4 1983009808
        %v1903 = vunpack.c.0.s8 %v1902
        %v1904 = vlaneseq
        %v1905 = vshrl.u32 %v1904, 7
        %v1906 = vsub.s32 %v1903, %v1905
        %v1907 = vrot.slane %v1893, %v1906
        %v1908 = vcombine.low %v1852, %v1868
        %v1909 = vcombine.high %v1852, %v1868
        %v1911 = vunpack.c.l.s4 1934713408
        %v1912 = vunpack.c.0.s8 %v1911
        %v1913 = vlaneseq
        %v1914 = vshrl.u32 %v1913, 7
        %v1915 = vsub.s32 %v1912, %v1914
        %v1916 = vrot.slane %v1908, %v1915
        %v1918 = vunpack.c.l.s4 1934713408
        %v1919 = vunpack.c.0.s8 %v1918
        %v1920 = vlaneseq
        %v1921 = vshrl.u32 %v1920, 7
        %v1922 = vsub.s32 %v1919, %v1921
        %v1923 = vrot.slane %v1909, %v1922
        %v1924 = vcombine.low %v1859, %v1875
        %v1925 = vcombine.high %v1859, %v1875
        %v1927 = vunpack.c.l.s4 1934713408
        %v1928 = vunpack.c.0.s8 %v1927
        %v1929 = vlaneseq
        %v1930 = vshrl.u32 %v1929, 7
        %v1931 = vsub.s32 %v1928, %v1930
        %v1932 = vrot.slane %v1924, %v1931
        %v1934 = vunpack.c.l.s4 1934713408
        %v1935 = vunpack.c.0.s8 %v1934
        %v1936 = vlaneseq
        %v1937 = vshrl.u32 %v1936, 7
        %v1938 = vsub.s32 %v1935, %v1937
        %v1939 = vrot.slane %v1925, %v1938
        %v1940 = vcombine.low %v1884, %v1900
        %v1941 = vcombine.high %v1884, %v1900
        %v1943 = vunpack.c.l.s4 1934713408
        %v1944 = vunpack.c.0.s8 %v1943
        %v1945 = vlaneseq
        %v1946 = vshrl.u32 %v1945, 7
        %v1947 = vsub.s32 %v1944, %v1946
        %v1948 = vrot.slane %v1940, %v1947
        %v1950 = vunpack.c.l.s4 1934713408
        %v1951 = vunpack.c.0.s8 %v1950
        %v1952 = vlaneseq
        %v1953 = vshrl.u32 %v1952, 7
        %v1954 = vsub.s32 %v1951, %v1953
        %v1955 = vrot.slane %v1941, %v1954
        %v1956 = vcombine.low %v1891, %v1907
        %v1957 = vcombine.high %v1891, %v1907
        %v1959 = vunpack.c.l.s4 1934713408
        %v1960 = vunpack.c.0.s8 %v1959
        %v1961 = vlaneseq
        %v1962 = vshrl.u32 %v1961, 7
        %v1963 = vsub.s32 %v1960, %v1962
        %v1964 = vrot.slane %v1956, %v1963
        %v1966 = vunpack.c.l.s4 1934713408
        %v1967 = vunpack.c.0.s8 %v1966
        %v1968 = vlaneseq
        %v1969 = vshrl.u32 %v1968, 7
        %v1970 = vsub.s32 %v1967, %v1969
        %v1971 = vrot.slane %v1957, %v1970
        %v1972 = vcombine.low %v1916, %v1948
        %v1973 = vcombine.high %v1916, %v1948
        %v1974 = vcombine.low %v1923, %v1955
        %v1975 = vcombine.high %v1923, %v1955
        %v1976 = vcombine.low %v1932, %v1964
        %v1977 = vcombine.high %v1932, %v1964
        %v1978 = vcombine.low %v1939, %v1971
        %v1979 = vcombine.high %v1939, %v1971
        %v1980 = vcombine.low %v454, %v462
        %v1981 = vcombine.high %v454, %v462
        %v1983 = vunpack.c.l.s4 1983009808
        %v1984 = vunpack.c.0.s8 %v1983
        %v1985 = vlaneseq
        %v1986 = vshrl.u32 %v1985, 7
        %v1987 = vsub.s32 %v1984, %v1986
        %v1988 = vrot.slane %v1980, %v1987
        %v1990 = vunpack.c.l.s4 1983009808
        %v1991 = vunpack.c.0.s8 %v1990
        %v1992 = vlaneseq
        %v1993 = vshrl.u32 %v1992, 7
        %v1994 = vsub.s32 %v1991, %v1993
        %v1995 = vrot.slane %v1981, %v1994
        %v1996 = vcombine.low %v458, %v466
        %v1997 = vcombine.high %v458, %v466
        %v1999 = vunpack.c.l.s4 1983009808
        %v2000 = vunpack.c.0.s8 %v1999
        %v2001 = vlaneseq
        %v2002 = vshrl.u32 %v2001, 7
        %v2003 = vsub.s32 %v2000, %v2002
        %v2004 = vrot.slane %v1996, %v2003
        %v2006 = vunpack.c.l.s4 1983009808
        %v2007 = vunpack.c.0.s8 %v2006
        %v2008 = vlaneseq
        %v2009 = vshrl.u32 %v2008, 7
        %v2010 = vsub.s32 %v2007, %v2009
        %v2011 = vrot.slane %v1997, %v2010
        %v2012 = vcombine.low %v470, %v478
        %v2013 = vcombine.high %v470, %v478
        %v2015 = vunpack.c.l.s4 1983009808
        %v2016 = vunpack.c.0.s8 %v2015
        %v2017 = vlaneseq
        %v2018 = vshrl.u32 %v2017, 7
        %v2019 = vsub.s32 %v2016, %v2018
        %v2020 = vrot.slane %v2012, %v2019
        %v2022 = vunpack.c.l.s4 1983009808
        %v2023 = vunpack.c.0.s8 %v2022
        %v2024 = vlaneseq
        %v2025 = vshrl.u32 %v2024, 7
        %v2026 = vsub.s32 %v2023, %v2025
        %v2027 = vrot.slane %v2013, %v2026
        %v2028 = vcombine.low %v474, %v482
        %v2029 = vcombine.high %v474, %v482
        %v2031 = vunpack.c.l.s4 1983009808
        %v2032 = vunpack.c.0.s8 %v2031
        %v2033 = vlaneseq
        %v2034 = vshrl.u32 %v2033, 7
        %v2035 = vsub.s32 %v2032, %v2034
        %v2036 = vrot.slane %v2028, %v2035
        %v2038 = vunpack.c.l.s4 1983009808
        %v2039 = vunpack.c.0.s8 %v2038
        %v2040 = vlaneseq
        %v2041 = vshrl.u32 %v2040, 7
        %v2042 = vsub.s32 %v2039, %v2041
        %v2043 = vrot.slane %v2029, %v2042
        %v2044 = vcombine.low %v1988, %v2004
        %v2045 = vcombine.high %v1988, %v2004
        %v2047 = vunpack.c.l.s4 1934713408
        %v2048 = vunpack.c.0.s8 %v2047
        %v2049 = vlaneseq
        %v2050 = vshrl.u32 %v2049, 7
        %v2051 = vsub.s32 %v2048, %v2050
        %v2052 = vrot.slane %v2044, %v2051
        %v2054 = vunpack.c.l.s4 1934713408
        %v2055 = vunpack.c.0.s8 %v2054
        %v2056 = vlaneseq
        %v2057 = vshrl.u32 %v2056, 7
        %v2058 = vsub.s32 %v2055, %v2057
        %v2059 = vrot.slane %v2045, %v2058
        %v2060 = vcombine.low %v1995, %v2011
        %v2061 = vcombine.high %v1995, %v2011
        %v2063 = vunpack.c.l.s4 1934713408
        %v2064 = vunpack.c.0.s8 %v2063
        %v2065 = vlaneseq
        %v2066 = vshrl.u32 %v2065, 7
        %v2067 = vsub.s32 %v2064, %v2066
        %v2068 = vrot.slane %v2060, %v2067
        %v2070 = vunpack.c.l.s4 1934713408
        %v2071 = vunpack.c.0.s8 %v2070
        %v2072 = vlaneseq
        %v2073 = vshrl.u32 %v2072, 7
        %v2074 = vsub.s32 %v2071, %v2073
        %v2075 = vrot.slane %v2061, %v2074
        %v2076 = vcombine.low %v2020, %v2036
        %v2077 = vcombine.high %v2020, %v2036
        %v2079 = vunpack.c.l.s4 1934713408
        %v2080 = vunpack.c.0.s8 %v2079
        %v2081 = vlaneseq
        %v2082 = vshrl.u32 %v2081, 7
        %v2083 = vsub.s32 %v2080, %v2082
        %v2084 = vrot.slane %v2076, %v2083
        %v2086 = vunpack.c.l.s4 1934713408
        %v2087 = vunpack.c.0.s8 %v2086
        %v2088 = vlaneseq
        %v2089 = vshrl.u32 %v2088, 7
        %v2090 = vsub.s32 %v2087, %v2089
        %v2091 = vrot.slane %v2077, %v2090
        %v2092 = vcombine.low %v2027, %v2043
        %v2093 = vcombine.high %v2027, %v2043
        %v2095 = vunpack.c.l.s4 1934713408
        %v2096 = vunpack.c.0.s8 %v2095
        %v2097 = vlaneseq
        %v2098 = vshrl.u32 %v2097, 7
        %v2099 = vsub.s32 %v2096, %v2098
        %v2100 = vrot.slane %v2092, %v2099
        %v2102 = vunpack.c.l.s4 1934713408
        %v2103 = vunpack.c.0.s8 %v2102
        %v2104 = vlaneseq
        %v2105 = vshrl.u32 %v2104, 7
        %v2106 = vsub.s32 %v2103, %v2105
        %v2107 = vrot.slane %v2093, %v2106
        %v2108 = vcombine.low %v2052, %v2084
        %v2109 = vcombine.high %v2052, %v2084
        %v2110 = vcombine.low %v2059, %v2091
        %v2111 = vcombine.high %v2059, %v2091
        %v2112 = vcombine.low %v2068, %v2100
        %v2113 = vcombine.high %v2068, %v2100
        %v2114 = vcombine.low %v2075, %v2107
        %v2115 = vcombine.high %v2075, %v2107
        %v2116 = vcombine.low %v359, %v367
        %v2117 = vcombine.high %v359, %v367
        %v2119 = vunpack.c.l.s4 1983009808
        %v2120 = vunpack.c.0.s8 %v2119
        %v2121 = vlaneseq
        %v2122 = vshrl.u32 %v2121, 7
        %v2123 = vsub.s32 %v2120, %v2122
        %v2124 = vrot.slane %v2116, %v2123
        %v2126 = vunpack.c.l.s4 1983009808
        %v2127 = vunpack.c.0.s8 %v2126
        %v2128 = vlaneseq
        %v2129 = vshrl.u32 %v2128, 7
        %v2130 = vsub.s32 %v2127, %v2129
        %v2131 = vrot.slane %v2117, %v2130
        %v2132 = vcombine.low %v363, %v371
        %v2133 = vcombine.high %v363, %v371
        %v2135 = vunpack.c.l.s4 1983009808
        %v2136 = vunpack.c.0.s8 %v2135
        %v2137 = vlaneseq
        %v2138 = vshrl.u32 %v2137, 7
        %v2139 = vsub.s32 %v2136, %v2138
        %v2140 = vrot.slane %v2132, %v2139
        %v2142 = vunpack.c.l.s4 1983009808
        %v2143 = vunpack.c.0.s8 %v2142
        %v2144 = vlaneseq
        %v2145 = vshrl.u32 %v2144, 7
        %v2146 = vsub.s32 %v2143, %v2145
        %v2147 = vrot.slane %v2133, %v2146
        %v2148 = vcombine.low %v375, %v383
        %v2149 = vcombine.high %v375, %v383
        %v2151 = vunpack.c.l.s4 1983009808
        %v2152 = vunpack.c.0.s8 %v2151
        %v2153 = vlaneseq
        %v2154 = vshrl.u32 %v2153, 7
        %v2155 = vsub.s32 %v2152, %v2154
        %v2156 = vrot.slane %v2148, %v2155
        %v2158 = vunpack.c.l.s4 1983009808
        %v2159 = vunpack.c.0.s8 %v2158
        %v2160 = vlaneseq
        %v2161 = vshrl.u32 %v2160, 7
        %v2162 = vsub.s32 %v2159, %v2161
        %v2163 = vrot.slane %v2149, %v2162
        %v2164 = vcombine.low %v379, %v387
        %v2165 = vcombine.high %v379, %v387
        %v2167 = vunpack.c.l.s4 1983009808
        %v2168 = vunpack.c.0.s8 %v2167
        %v2169 = vlaneseq
        %v2170 = vshrl.u32 %v2169, 7
        %v2171 = vsub.s32 %v2168, %v2170
        %v2172 = vrot.slane %v2164, %v2171
        %v2174 = vunpack.c.l.s4 1983009808
        %v2175 = vunpack.c.0.s8 %v2174
        %v2176 = vlaneseq
        %v2177 = vshrl.u32 %v2176, 7
        %v2178 = vsub.s32 %v2175, %v2177
        %v2179 = vrot.slane %v2165, %v2178
        %v2180 = vcombine.low %v2124, %v2140
        %v2181 = vcombine.high %v2124, %v2140
        %v2183 = vunpack.c.l.s4 1934713408
        %v2184 = vunpack.c.0.s8 %v2183
        %v2185 = vlaneseq
        %v2186 = vshrl.u32 %v2185, 7
        %v2187 = vsub.s32 %v2184, %v2186
        %v2188 = vrot.slane %v2180, %v2187
        %v2190 = vunpack.c.l.s4 1934713408
        %v2191 = vunpack.c.0.s8 %v2190
        %v2192 = vlaneseq
        %v2193 = vshrl.u32 %v2192, 7
        %v2194 = vsub.s32 %v2191, %v2193
        %v2195 = vrot.slane %v2181, %v2194
        %v2196 = vcombine.low %v2131, %v2147
        %v2197 = vcombine.high %v2131, %v2147
        %v2199 = vunpack.c.l.s4 1934713408
        %v2200 = vunpack.c.0.s8 %v2199
        %v2201 = vlaneseq
        %v2202 = vshrl.u32 %v2201, 7
        %v2203 = vsub.s32 %v2200, %v2202
        %v2204 = vrot.slane %v2196, %v2203
        %v2206 = vunpack.c.l.s4 1934713408
        %v2207 = vunpack.c.0.s8 %v2206
        %v2208 = vlaneseq
        %v2209 = vshrl.u32 %v2208, 7
        %v2210 = vsub.s32 %v2207, %v2209
        %v2211 = vrot.slane %v2197, %v2210
        %v2212 = vcombine.low %v2156, %v2172
        %v2213 = vcombine.high %v2156, %v2172
        %v2215 = vunpack.c.l.s4 1934713408
        %v2216 = vunpack.c.0.s8 %v2215
        %v2217 = vlaneseq
        %v2218 = vshrl.u32 %v2217, 7
        %v2219 = vsub.s32 %v2216, %v2218
        %v2220 = vrot.slane %v2212, %v2219
        %v2222 = vunpack.c.l.s4 1934713408
        %v2223 = vunpack.c.0.s8 %v2222
        %v2224 = vlaneseq
        %v2225 = vshrl.u32 %v2224, 7
        %v2226 = vsub.s32 %v2223, %v2225
        %v2227 = vrot.slane %v2213, %v2226
        %v2228 = vcombine.low %v2163, %v2179
        %v2229 = vcombine.high %v2163, %v2179
        %v2231 = vunpack.c.l.s4 1934713408
        %v2232 = vunpack.c.0.s8 %v2231
        %v2233 = vlaneseq
        %v2234 = vshrl.u32 %v2233, 7
        %v2235 = vsub.s32 %v2232, %v2234
        %v2236 = vrot.slane %v2228, %v2235
        %v2238 = vunpack.c.l.s4 1934713408
        %v2239 = vunpack.c.0.s8 %v2238
        %v2240 = vlaneseq
        %v2241 = vshrl.u32 %v2240, 7
        %v2242 = vsub.s32 %v2239, %v2241
        %v2243 = vrot.slane %v2229, %v2242
        %v2244 = vcombine.low %v2188, %v2220
        %v2245 = vcombine.high %v2188, %v2220
        %v2246 = vcombine.low %v2195, %v2227
        %v2247 = vcombine.high %v2195, %v2227
        %v2248 = vcombine.low %v2204, %v2236
        %v2249 = vcombine.high %v2204, %v2236
        %v2250 = vcombine.low %v2211, %v2243
        %v2251 = vcombine.high %v2211, %v2243
        %v2252 = vcombine.low %v391, %v399
        %v2253 = vcombine.high %v391, %v399
        %v2255 = vunpack.c.l.s4 1983009808
        %v2256 = vunpack.c.0.s8 %v2255
        %v2257 = vlaneseq
        %v2258 = vshrl.u32 %v2257, 7
        %v2259 = vsub.s32 %v2256, %v2258
        %v2260 = vrot.slane %v2252, %v2259
        %v2262 = vunpack.c.l.s4 1983009808
        %v2263 = vunpack.c.0.s8 %v2262
        %v2264 = vlaneseq
        %v2265 = vshrl.u32 %v2264, 7
        %v2266 = vsub.s32 %v2263, %v2265
        %v2267 = vrot.slane %v2253, %v2266
        %v2268 = vcombine.low %v395, %v403
        %v2269 = vcombine.high %v395, %v403
        %v2271 = vunpack.c.l.s4 1983009808
        %v2272 = vunpack.c.0.s8 %v2271
        %v2273 = vlaneseq
        %v2274 = vshrl.u32 %v2273, 7
        %v2275 = vsub.s32 %v2272, %v2274
        %v2276 = vrot.slane %v2268, %v2275
        %v2278 = vunpack.c.l.s4 1983009808
        %v2279 = vunpack.c.0.s8 %v2278
        %v2280 = vlaneseq
        %v2281 = vshrl.u32 %v2280, 7
        %v2282 = vsub.s32 %v2279, %v2281
        %v2283 = vrot.slane %v2269, %v2282
        %v2284 = vcombine.low %v407, %v415
        %v2285 = vcombine.high %v407, %v415
        %v2287 = vunpack.c.l.s4 1983009808
        %v2288 = vunpack.c.0.s8 %v2287
        %v2289 = vlaneseq
        %v2290 = vshrl.u32 %v2289, 7
        %v2291 = vsub.s32 %v2288, %v2290
        %v2292 = vrot.slane %v2284, %v2291
        %v2294 = vunpack.c.l.s4 1983009808
        %v2295 = vunpack.c.0.s8 %v2294
        %v2296 = vlaneseq
        %v2297 = vshrl.u32 %v2296, 7
        %v2298 = vsub.s32 %v2295, %v2297
        %v2299 = vrot.slane %v2285, %v2298
        %v2300 = vcombine.low %v411, %v419
        %v2301 = vcombine.high %v411, %v419
        %v2303 = vunpack.c.l.s4 1983009808
        %v2304 = vunpack.c.0.s8 %v2303
        %v2305 = vlaneseq
        %v2306 = vshrl.u32 %v2305, 7
        %v2307 = vsub.s32 %v2304, %v2306
        %v2308 = vrot.slane %v2300, %v2307
        %v2310 = vunpack.c.l.s4 1983009808
        %v2311 = vunpack.c.0.s8 %v2310
        %v2312 = vlaneseq
        %v2313 = vshrl.u32 %v2312, 7
        %v2314 = vsub.s32 %v2311, %v2313
        %v2315 = vrot.slane %v2301, %v2314
        %v2316 = vcombine.low %v2260, %v2276
        %v2317 = vcombine.high %v2260, %v2276
        %v2319 = vunpack.c.l.s4 1934713408
        %v2320 = vunpack.c.0.s8 %v2319
        %v2321 = vlaneseq
        %v2322 = vshrl.u32 %v2321, 7
        %v2323 = vsub.s32 %v2320, %v2322
        %v2324 = vrot.slane %v2316, %v2323
        %v2326 = vunpack.c.l.s4 1934713408
        %v2327 = vunpack.c.0.s8 %v2326
        %v2328 = vlaneseq
        %v2329 = vshrl.u32 %v2328, 7
        %v2330 = vsub.s32 %v2327, %v2329
        %v2331 = vrot.slane %v2317, %v2330
        %v2332 = vcombine.low %v2267, %v2283
        %v2333 = vcombine.high %v2267, %v2283
        %v2335 = vunpack.c.l.s4 1934713408
        %v2336 = vunpack.c.0.s8 %v2335
        %v2337 = vlaneseq
        %v2338 = vshrl.u32 %v2337, 7
        %v2339 = vsub.s32 %v2336, %v2338
        %v2340 = vrot.slane %v2332, %v2339
        %v2342 = vunpack.c.l.s4 1934713408
        %v2343 = vunpack.c.0.s8 %v2342
        %v2344 = vlaneseq
        %v2345 = vshrl.u32 %v2344, 7
        %v2346 = vsub.s32 %v2343, %v2345
        %v2347 = vrot.slane %v2333, %v2346
        %v2348 = vcombine.low %v2292, %v2308
        %v2349 = vcombine.high %v2292, %v2308
        %v2351 = vunpack.c.l.s4 1934713408
        %v2352 = vunpack.c.0.s8 %v2351
        %v2353 = vlaneseq
        %v2354 = vshrl.u32 %v2353, 7
        %v2355 = vsub.s32 %v2352, %v2354
        %v2356 = vrot.slane %v2348, %v2355
        %v2358 = vunpack.c.l.s4 1934713408
        %v2359 = vunpack.c.0.s8 %v2358
        %v2360 = vlaneseq
        %v2361 = vshrl.u32 %v2360, 7
        %v2362 = vsub.s32 %v2359, %v2361
        %v2363 = vrot.slane %v2349, %v2362
        %v2364 = vcombine.low %v2299, %v2315
        %v2365 = vcombine.high %v2299, %v2315
        %v2367 = vunpack.c.l.s4 1934713408
        %v2368 = vunpack.c.0.s8 %v2367
        %v2369 = vlaneseq
        %v2370 = vshrl.u32 %v2369, 7
        %v2371 = vsub.s32 %v2368, %v2370
        %v2372 = vrot.slane %v2364, %v2371
        %v2374 = vunpack.c.l.s4 1934713408
        %v2375 = vunpack.c.0.s8 %v2374
        %v2376 = vlaneseq
        %v2377 = vshrl.u32 %v2376, 7
        %v2378 = vsub.s32 %v2375, %v2377
        %v2379 = vrot.slane %v2365, %v2378
        %v2380 = vcombine.low %v2324, %v2356
        %v2381 = vcombine.high %v2324, %v2356
        %v2382 = vcombine.low %v2331, %v2363
        %v2383 = vcombine.high %v2331, %v2363
        %v2384 = vcombine.low %v2340, %v2372
        %v2385 = vcombine.high %v2340, %v2372
        %v2386 = vcombine.low %v2347, %v2379
        %v2387 = vcombine.high %v2347, %v2379
        %v2388 = vcombine.low %v423, %v431
        %v2389 = vcombine.high %v423, %v431
        %v2391 = vunpack.c.l.s4 1983009808
        %v2392 = vunpack.c.0.s8 %v2391
        %v2393 = vlaneseq
        %v2394 = vshrl.u32 %v2393, 7
        %v2395 = vsub.s32 %v2392, %v2394
        %v2396 = vrot.slane %v2388, %v2395
        %v2398 = vunpack.c.l.s4 1983009808
        %v2399 = vunpack.c.0.s8 %v2398
        %v2400 = vlaneseq
        %v2401 = vshrl.u32 %v2400, 7
        %v2402 = vsub.s32 %v2399, %v2401
        %v2403 = vrot.slane %v2389, %v2402
        %v2404 = vcombine.low %v427, %v435
        %v2405 = vcombine.high %v427, %v435
        %v2407 = vunpack.c.l.s4 1983009808
        %v2408 = vunpack.c.0.s8 %v2407
        %v2409 = vlaneseq
        %v2410 = vshrl.u32 %v2409, 7
        %v2411 = vsub.s32 %v2408, %v2410
        %v2412 = vrot.slane %v2404, %v2411
        %v2414 = vunpack.c.l.s4 1983009808
        %v2415 = vunpack.c.0.s8 %v2414
        %v2416 = vlaneseq
        %v2417 = vshrl.u32 %v2416, 7
        %v2418 = vsub.s32 %v2415, %v2417
        %v2419 = vrot.slane %v2405, %v2418
        %v2420 = vcombine.low %v439, %v447
        %v2421 = vcombine.high %v439, %v447
        %v2423 = vunpack.c.l.s4 1983009808
        %v2424 = vunpack.c.0.s8 %v2423
        %v2425 = vlaneseq
        %v2426 = vshrl.u32 %v2425, 7
        %v2427 = vsub.s32 %v2424, %v2426
        %v2428 = vrot.slane %v2420, %v2427
        %v2430 = vunpack.c.l.s4 1983009808
        %v2431 = vunpack.c.0.s8 %v2430
        %v2432 = vlaneseq
        %v2433 = vshrl.u32 %v2432, 7
        %v2434 = vsub.s32 %v2431, %v2433
        %v2435 = vrot.slane %v2421, %v2434
        %v2436 = vcombine.low %v443, %v451
        %v2437 = vcombine.high %v443, %v451
        %v2439 = vunpack.c.l.s4 1983009808
        %v2440 = vunpack.c.0.s8 %v2439
        %v2441 = vlaneseq
        %v2442 = vshrl.u32 %v2441, 7
        %v2443 = vsub.s32 %v2440, %v2442
        %v2444 = vrot.slane %v2436, %v2443
        %v2446 = vunpack.c.l.s4 1983009808
        %v2447 = vunpack.c.0.s8 %v2446
        %v2448 = vlaneseq
        %v2449 = vshrl.u32 %v2448, 7
        %v2450 = vsub.s32 %v2447, %v2449
        %v2451 = vrot.slane %v2437, %v2450
        %v2452 = vcombine.low %v2396, %v2412
        %v2453 = vcombine.high %v2396, %v2412
        %v2455 = vunpack.c.l.s4 1934713408
        %v2456 = vunpack.c.0.s8 %v2455
        %v2457 = vlaneseq
        %v2458 = vshrl.u32 %v2457, 7
        %v2459 = vsub.s32 %v2456, %v2458
        %v2460 = vrot.slane %v2452, %v2459
        %v2462 = vunpack.c.l.s4 1934713408
        %v2463 = vunpack.c.0.s8 %v2462
        %v2464 = vlaneseq
        %v2465 = vshrl.u32 %v2464, 7
        %v2466 = vsub.s32 %v2463, %v2465
        %v2467 = vrot.slane %v2453, %v2466
        %v2468 = vcombine.low %v2403, %v2419
        %v2469 = vcombine.high %v2403, %v2419
        %v2471 = vunpack.c.l.s4 1934713408
        %v2472 = vunpack.c.0.s8 %v2471
        %v2473 = vlaneseq
        %v2474 = vshrl.u32 %v2473, 7
        %v2475 = vsub.s32 %v2472, %v2474
        %v2476 = vrot.slane %v2468, %v2475
        %v2478 = vunpack.c.l.s4 1934713408
        %v2479 = vunpack.c.0.s8 %v2478
        %v2480 = vlaneseq
        %v2481 = vshrl.u32 %v2480, 7
        %v2482 = vsub.s32 %v2479, %v2481
        %v2483 = vrot.slane %v2469, %v2482
        %v2484 = vcombine.low %v2428, %v2444
        %v2485 = vcombine.high %v2428, %v2444
        %v2487 = vunpack.c.l.s4 1934713408
        %v2488 = vunpack.c.0.s8 %v2487
        %v2489 = vlaneseq
        %v2490 = vshrl.u32 %v2489, 7
        %v2491 = vsub.s32 %v2488, %v2490
        %v2492 = vrot.slane %v2484, %v2491
        %v2494 = vunpack.c.l.s4 1934713408
        %v2495 = vunpack.c.0.s8 %v2494
        %v2496 = vlaneseq
        %v2497 = vshrl.u32 %v2496, 7
        %v2498 = vsub.s32 %v2495, %v2497
        %v2499 = vrot.slane %v2485, %v2498
        %v2500 = vcombine.low %v2435, %v2451
        %v2501 = vcombine.high %v2435, %v2451
        %v2503 = vunpack.c.l.s4 1934713408
        %v2504 = vunpack.c.0.s8 %v2503
        %v2505 = vlaneseq
        %v2506 = vshrl.u32 %v2505, 7
        %v2507 = vsub.s32 %v2504, %v2506
        %v2508 = vrot.slane %v2500, %v2507
        %v2510 = vunpack.c.l.s4 1934713408
        %v2511 = vunpack.c.0.s8 %v2510
        %v2512 = vlaneseq
        %v2513 = vshrl.u32 %v2512, 7
        %v2514 = vsub.s32 %v2511, %v2513
        %v2515 = vrot.slane %v2501, %v2514
        %v2516 = vcombine.low %v2460, %v2492
        %v2517 = vcombine.high %v2460, %v2492
        %v2518 = vcombine.low %v2467, %v2499
        %v2519 = vcombine.high %v2467, %v2499
        %v2520 = vcombine.low %v2476, %v2508
        %v2521 = vcombine.high %v2476, %v2508
        %v2522 = vcombine.low %v2483, %v2515
        %v2523 = vcombine.high %v2483, %v2515
        %v2524 = vcombine.low %v455, %v463
        %v2525 = vcombine.high %v455, %v463
        %v2527 = vunpack.c.l.s4 1983009808
        %v2528 = vunpack.c.0.s8 %v2527
        %v2529 = vlaneseq
        %v2530 = vshrl.u32 %v2529, 7
        %v2531 = vsub.s32 %v2528, %v2530
        %v2532 = vrot.slane %v2524, %v2531
        %v2534 = vunpack.c.l.s4 1983009808
        %v2535 = vunpack.c.0.s8 %v2534
        %v2536 = vlaneseq
        %v2537 = vshrl.u32 %v2536, 7
        %v2538 = vsub.s32 %v2535, %v2537
        %v2539 = vrot.slane %v2525, %v2538
        %v2540 = vcombine.low %v459, %v467
        %v2541 = vcombine.high %v459, %v467
        %v2543 = vunpack.c.l.s4 1983009808
        %v2544 = vunpack.c.0.s8 %v2543
        %v2545 = vlaneseq
        %v2546 = vshrl.u32 %v2545, 7
        %v2547 = vsub.s32 %v2544, %v2546
        %v2548 = vrot.slane %v2540, %v2547
        %v2550 = vunpack.c.l.s4 1983009808
        %v2551 = vunpack.c.0.s8 %v2550
        %v2552 = vlaneseq
        %v2553 = vshrl.u32 %v2552, 7
        %v2554 = vsub.s32 %v2551, %v2553
        %v2555 = vrot.slane %v2541, %v2554
        %v2556 = vcombine.low %v471, %v479
        %v2557 = vcombine.high %v471, %v479
        %v2559 = vunpack.c.l.s4 1983009808
        %v2560 = vunpack.c.0.s8 %v2559
        %v2561 = vlaneseq
        %v2562 = vshrl.u32 %v2561, 7
        %v2563 = vsub.s32 %v2560, %v2562
        %v2564 = vrot.slane %v2556, %v2563
        %v2566 = vunpack.c.l.s4 1983009808
        %v2567 = vunpack.c.0.s8 %v2566
        %v2568 = vlaneseq
        %v2569 = vshrl.u32 %v2568, 7
        %v2570 = vsub.s32 %v2567, %v2569
        %v2571 = vrot.slane %v2557, %v2570
        %v2572 = vcombine.low %v475, %v483
        %v2573 = vcombine.high %v475, %v483
        %v2575 = vunpack.c.l.s4 1983009808
        %v2576 = vunpack.c.0.s8 %v2575
        %v2577 = vlaneseq
        %v2578 = vshrl.u32 %v2577, 7
        %v2579 = vsub.s32 %v2576, %v2578
        %v2580 = vrot.slane %v2572, %v2579
        %v2582 = vunpack.c.l.s4 1983009808
        %v2583 = vunpack.c.0.s8 %v2582
        %v2584 = vlaneseq
        %v2585 = vshrl.u32 %v2584, 7
        %v2586 = vsub.s32 %v2583, %v2585
        %v2587 = vrot.slane %v2573, %v2586
        %v2588 = vcombine.low %v2532, %v2548
        %v2589 = vcombine.high %v2532, %v2548
        %v2591 = vunpack.c.l.s4 1934713408
        %v2592 = vunpack.c.0.s8 %v2591
        %v2593 = vlaneseq
        %v2594 = vshrl.u32 %v2593, 7
        %v2595 = vsub.s32 %v2592, %v2594
        %v2596 = vrot.slane %v2588, %v2595
        %v2598 = vunpack.c.l.s4 1934713408
        %v2599 = vunpack.c.0.s8 %v2598
        %v2600 = vlaneseq
        %v2601 = vshrl.u32 %v2600, 7
        %v2602 = vsub.s32 %v2599, %v2601
        %v2603 = vrot.slane %v2589, %v2602
        %v2604 = vcombine.low %v2539, %v2555
        %v2605 = vcombine.high %v2539, %v2555
        %v2607 = vunpack.c.l.s4 1934713408
        %v2608 = vunpack.c.0.s8 %v2607
        %v2609 = vlaneseq
        %v2610 = vshrl.u32 %v2609, 7
        %v2611 = vsub.s32 %v2608, %v2610
        %v2612 = vrot.slane %v2604, %v2611
        %v2614 = vunpack.c.l.s4 1934713408
        %v2615 = vunpack.c.0.s8 %v2614
        %v2616 = vlaneseq
        %v2617 = vshrl.u32 %v2616, 7
        %v2618 = vsub.s32 %v2615, %v2617
        %v2619 = vrot.slane %v2605, %v2618
        %v2620 = vcombine.low %v2564, %v2580
        %v2621 = vcombine.high %v2564, %v2580
        %v2623 = vunpack.c.l.s4 1934713408
        %v2624 = vunpack.c.0.s8 %v2623
        %v2625 = vlaneseq
        %v2626 = vshrl.u32 %v2625, 7
        %v2627 = vsub.s32 %v2624, %v2626
        %v2628 = vrot.slane %v2620, %v2627
        %v2630 = vunpack.c.l.s4 1934713408
        %v2631 = vunpack.c.0.s8 %v2630
        %v2632 = vlaneseq
        %v2633 = vshrl.u32 %v2632, 7
        %v2634 = vsub.s32 %v2631, %v2633
        %v2635 = vrot.slane %v2621, %v2634
        %v2636 = vcombine.low %v2571, %v2587
        %v2637 = vcombine.high %v2571, %v2587
        %v2639 = vunpack.c.l.s4 1934713408
        %v2640 = vunpack.c.0.s8 %v2639
        %v2641 = vlaneseq
        %v2642 = vshrl.u32 %v2641, 7
        %v2643 = vsub.s32 %v2640, %v2642
        %v2644 = vrot.slane %v2636, %v2643
        %v2646 = vunpack.c.l.s4 1934713408
        %v2647 = vunpack.c.0.s8 %v2646
        %v2648 = vlaneseq
        %v2649 = vshrl.u32 %v2648, 7
        %v2650 = vsub.s32 %v2647, %v2649
        %v2651 = vrot.slane %v2637, %v2650
        %v2652 = vcombine.low %v2596, %v2628
        %v2653 = vcombine.high %v2596, %v2628
        %v2654 = vcombine.low %v2603, %v2635
        %v2655 = vcombine.high %v2603, %v2635
        %v2656 = vcombine.low %v2612, %v2644
        %v2657 = vcombine.high %v2612, %v2644
        %v2658 = vcombine.low %v2619, %v2651
        %v2659 = vcombine.high %v2619, %v2651
        %v2660 = vadd.f32 %v228, %v612
        %v2661 = vadd.f32 %v229, %v748
        %v2662 = vadd.f32 %v230, %v884
        %v2663 = vadd.f32 %v231, %v1020
        %v2664 = vadd.f32 %v232, %v613
        %v2665 = vadd.f32 %v233, %v749
        %v2666 = vadd.f32 %v234, %v885
        %v2667 = vadd.f32 %v235, %v1021
        %v2668 = vadd.f32 %v236, %v614
        %v2669 = vadd.f32 %v237, %v750
        %v2670 = vadd.f32 %v238, %v886
        %v2671 = vadd.f32 %v239, %v1022
        %v2672 = vadd.f32 %v240, %v615
        %v2673 = vadd.f32 %v241, %v751
        %v2674 = vadd.f32 %v242, %v887
        %v2675 = vadd.f32 %v243, %v1023
        %v2676 = vadd.f32 %v244, %v616
        %v2677 = vadd.f32 %v245, %v752
        %v2678 = vadd.f32 %v246, %v888
        %v2679 = vadd.f32 %v247, %v1024
        %v2680 = vadd.f32 %v248, %v617
        %v2681 = vadd.f32 %v249, %v753
        %v2682 = vadd.f32 %v250, %v889
        %v2683 = vadd.f32 %v251, %v1025
        %v2684 = vadd.f32 %v252, %v618
        %v2685 = vadd.f32 %v253, %v754
        %v2686 = vadd.f32 %v254, %v890
        %v2687 = vadd.f32 %v255, %v1026
        %v2688 = vadd.f32 %v256, %v619
        %v2689 = vadd.f32 %v257, %v755
        %v2690 = vadd.f32 %v258, %v891
        %v2691 = vadd.f32 %v259, %v1027
        %v2692 = vadd.f32 %v260, %v1156
        %v2693 = vadd.f32 %v261, %v1292
        %v2694 = vadd.f32 %v262, %v1428
        %v2695 = vadd.f32 %v263, %v1564
        %v2696 = vadd.f32 %v264, %v1157
        %v2697 = vadd.f32 %v265, %v1293
        %v2698 = vadd.f32 %v266, %v1429
        %v2699 = vadd.f32 %v267, %v1565
        %v2700 = vadd.f32 %v268, %v1158
        %v2701 = vadd.f32 %v269, %v1294
        %v2702 = vadd.f32 %v270, %v1430
        %v2703 = vadd.f32 %v271, %v1566
        %v2704 = vadd.f32 %v272, %v1159
        %v2705 = vadd.f32 %v273, %v1295
        %v2706 = vadd.f32 %v274, %v1431
        %v2707 = vadd.f32 %v275, %v1567
        %v2708 = vadd.f32 %v276, %v1160
        %v2709 = vadd.f32 %v277, %v1296
        %v2710 = vadd.f32 %v278, %v1432
        %v2711 = vadd.f32 %v279, %v1568
        %v2712 = vadd.f32 %v280, %v1161
        %v2713 = vadd.f32 %v281, %v1297
        %v2714 = vadd.f32 %v282, %v1433
        %v2715 = vadd.f32 %v283, %v1569
        %v2716 = vadd.f32 %v284, %v1162
        %v2717 = vadd.f32 %v285, %v1298
        %v2718 = vadd.f32 %v286, %v1434
        %v2719 = vadd.f32 %v287, %v1570
        %v2720 = vadd.f32 %v288, %v1163
        %v2721 = vadd.f32 %v289, %v1299
        %v2722 = vadd.f32 %v290, %v1435
        %v2723 = vadd.f32 %v291, %v1571
        %v2724 = vadd.f32 %v292, %v1700
        %v2725 = vadd.f32 %v293, %v1836
        %v2726 = vadd.f32 %v294, %v1972
        %v2727 = vadd.f32 %v295, %v2108
        %v2728 = vadd.f32 %v296, %v1701
        %v2729 = vadd.f32 %v297, %v1837
        %v2730 = vadd.f32 %v298, %v1973
        %v2731 = vadd.f32 %v299, %v2109
        %v2732 = vadd.f32 %v300, %v1702
        %v2733 = vadd.f32 %v301, %v1838
        %v2734 = vadd.f32 %v302, %v1974
        %v2735 = vadd.f32 %v303, %v2110
        %v2736 = vadd.f32 %v304, %v1703
        %v2737 = vadd.f32 %v305, %v1839
        %v2738 = vadd.f32 %v306, %v1975
        %v2739 = vadd.f32 %v307, %v2111
        %v2740 = vadd.f32 %v308, %v1704
        %v2741 = vadd.f32 %v309, %v1840
        %v2742 = vadd.f32 %v310, %v1976
        %v2743 = vadd.f32 %v311, %v2112
        %v2744 = vadd.f32 %v312, %v1705
        %v2745 = vadd.f32 %v313, %v1841
        %v2746 = vadd.f32 %v314, %v1977
        %v2747 = vadd.f32 %v315, %v2113
        %v2748 = vadd.f32 %v316, %v1706
        %v2749 = vadd.f32 %v317, %v1842
        %v2750 = vadd.f32 %v318, %v1978
        %v2751 = vadd.f32 %v319, %v2114
        %v2752 = vadd.f32 %v320, %v1707
        %v2753 = vadd.f32 %v321, %v1843
        %v2754 = vadd.f32 %v322, %v1979
        %v2755 = vadd.f32 %v323, %v2115
        %v2756 = vadd.f32 %v324, %v2244
        %v2757 = vadd.f32 %v325, %v2380
        %v2758 = vadd.f32 %v326, %v2516
        %v2759 = vadd.f32 %v327, %v2652
        %v2760 = vadd.f32 %v328, %v2245
        %v2761 = vadd.f32 %v329, %v2381
        %v2762 = vadd.f32 %v330, %v2517
        %v2763 = vadd.f32 %v331, %v2653
        %v2764 = vadd.f32 %v332, %v2246
        %v2765 = vadd.f32 %v333, %v2382
        %v2766 = vadd.f32 %v334, %v2518
        %v2767 = vadd.f32 %v335, %v2654
        %v2768 = vadd.f32 %v336, %v2247
        %v2769 = vadd.f32 %v337, %v2383
        %v2770 = vadd.f32 %v338, %v2519
        %v2771 = vadd.f32 %v339, %v2655
        %v2772 = vadd.f32 %v340, %v2248
        %v2773 = vadd.f32 %v341, %v2384
        %v2774 = vadd.f32 %v342, %v2520
        %v2775 = vadd.f32 %v343, %v2656
        %v2776 = vadd.f32 %v344, %v2249
        %v2777 = vadd.f32 %v345, %v2385
        %v2778 = vadd.f32 %v346, %v2521
        %v2779 = vadd.f32 %v347, %v2657
        %v2780 = vadd.f32 %v348, %v2250
        %v2781 = vadd.f32 %v349, %v2386
        %v2782 = vadd.f32 %v350, %v2522
        %v2783 = vadd.f32 %v351, %v2658
        %v2784 = vadd.f32 %v352, %v2251
        %v2785 = vadd.f32 %v353, %v2387
        %v2786 = vadd.f32 %v354, %v2523
        %v2787 = vadd.f32 %v355, %v2659
        %v2788 = vmul.f32 %v2660, 0.5
        %v2789 = vmul.f32 %v2661, 0.5
        %v2790 = vmul.f32 %v2662, 0.5
        %v2791 = vmul.f32 %v2663, 0.5
        %v2792 = vmul.f32 %v2664, 0.5
        %v2793 = vmul.f32 %v2665, 0.5
        %v2794 = vmul.f32 %v2666, 0.5
        %v2795 = vmul.f32 %v2667, 0.5
        %v2796 = vmul.f32 %v2668, 0.5
        %v2797 = vmul.f32 %v2669, 0.5
        %v2798 = vmul.f32 %v2670, 0.5
        %v2799 = vmul.f32 %v2671, 0.5
        %v2800 = vmul.f32 %v2672, 0.5
        %v2801 = vmul.f32 %v2673, 0.5
        %v2802 = vmul.f32 %v2674, 0.5
        %v2803 = vmul.f32 %v2675, 0.5
        %v2804 = vmul.f32 %v2676, 0.5
        %v2805 = vmul.f32 %v2677, 0.5
        %v2806 = vmul.f32 %v2678, 0.5
        %v2807 = vmul.f32 %v2679, 0.5
        %v2808 = vmul.f32 %v2680, 0.5
        %v2809 = vmul.f32 %v2681, 0.5
        %v2810 = vmul.f32 %v2682, 0.5
        %v2811 = vmul.f32 %v2683, 0.5
        %v2812 = vmul.f32 %v2684, 0.5
        %v2813 = vmul.f32 %v2685, 0.5
        %v2814 = vmul.f32 %v2686, 0.5
        %v2815 = vmul.f32 %v2687, 0.5
        %v2816 = vmul.f32 %v2688, 0.5
        %v2817 = vmul.f32 %v2689, 0.5
        %v2818 = vmul.f32 %v2690, 0.5
        %v2819 = vmul.f32 %v2691, 0.5
        %v2820 = vmul.f32 %v2692, 0.5
        %v2821 = vmul.f32 %v2693, 0.5
        %v2822 = vmul.f32 %v2694, 0.5
        %v2823 = vmul.f32 %v2695, 0.5
        %v2824 = vmul.f32 %v2696, 0.5
        %v2825 = vmul.f32 %v2697, 0.5
        %v2826 = vmul.f32 %v2698, 0.5
        %v2827 = vmul.f32 %v2699, 0.5
        %v2828 = vmul.f32 %v2700, 0.5
        %v2829 = vmul.f32 %v2701, 0.5
        %v2830 = vmul.f32 %v2702, 0.5
        %v2831 = vmul.f32 %v2703, 0.5
        %v2832 = vmul.f32 %v2704, 0.5
        %v2833 = vmul.f32 %v2705, 0.5
        %v2834 = vmul.f32 %v2706, 0.5
        %v2835 = vmul.f32 %v2707, 0.5
        %v2836 = vmul.f32 %v2708, 0.5
        %v2837 = vmul.f32 %v2709, 0.5
        %v2838 = vmul.f32 %v2710, 0.5
        %v2839 = vmul.f32 %v2711, 0.5
        %v2840 = vmul.f32 %v2712, 0.5
        %v2841 = vmul.f32 %v2713, 0.5
        %v2842 = vmul.f32 %v2714, 0.5
        %v2843 = vmul.f32 %v2715, 0.5
        %v2844 = vmul.f32 %v2716, 0.5
        %v2845 = vmul.f32 %v2717, 0.5
        %v2846 = vmul.f32 %v2718, 0.5
        %v2847 = vmul.f32 %v2719, 0.5
        %v2848 = vmul.f32 %v2720, 0.5
        %v2849 = vmul.f32 %v2721, 0.5
        %v2850 = vmul.f32 %v2722, 0.5
        %v2851 = vmul.f32 %v2723, 0.5
        %v2852 = vmul.f32 %v2724, 0.5
        %v2853 = vmul.f32 %v2725, 0.5
        %v2854 = vmul.f32 %v2726, 0.5
        %v2855 = vmul.f32 %v2727, 0.5
        %v2856 = vmul.f32 %v2728, 0.5
        %v2857 = vmul.f32 %v2729, 0.5
        %v2858 = vmul.f32 %v2730, 0.5
        %v2859 = vmul.f32 %v2731, 0.5
        %v2860 = vmul.f32 %v2732, 0.5
        %v2861 = vmul.f32 %v2733, 0.5
        %v2862 = vmul.f32 %v2734, 0.5
        %v2863 = vmul.f32 %v2735, 0.5
        %v2864 = vmul.f32 %v2736, 0.5
        %v2865 = vmul.f32 %v2737, 0.5
        %v2866 = vmul.f32 %v2738, 0.5
        %v2867 = vmul.f32 %v2739, 0.5
        %v2868 = vmul.f32 %v2740, 0.5
        %v2869 = vmul.f32 %v2741, 0.5
        %v2870 = vmul.f32 %v2742, 0.5
        %v2871 = vmul.f32 %v2743, 0.5
        %v2872 = vmul.f32 %v2744, 0.5
        %v2873 = vmul.f32 %v2745, 0.5
        %v2874 = vmul.f32 %v2746, 0.5
        %v2875 = vmul.f32 %v2747, 0.5
        %v2876 = vmul.f32 %v2748, 0.5
        %v2877 = vmul.f32 %v2749, 0.5
        %v2878 = vmul.f32 %v2750, 0.5
        %v2879 = vmul.f32 %v2751, 0.5
        %v2880 = vmul.f32 %v2752, 0.5
        %v2881 = vmul.f32 %v2753, 0.5
        %v2882 = vmul.f32 %v2754, 0.5
        %v2883 = vmul.f32 %v2755, 0.5
        %v2884 = vmul.f32 %v2756, 0.5
        %v2885 = vmul.f32 %v2757, 0.5
        %v2886 = vmul.f32 %v2758, 0.5
        %v2887 = vmul.f32 %v2759, 0.5
        %v2888 = vmul.f32 %v2760, 0.5
        %v2889 = vmul.f32 %v2761, 0.5
        %v2890 = vmul.f32 %v2762, 0.5
        %v2891 = vmul.f32 %v2763, 0.5
        %v2892 = vmul.f32 %v2764, 0.5
        %v2893 = vmul.f32 %v2765, 0.5
        %v2894 = vmul.f32 %v2766, 0.5
        %v2895 = vmul.f32 %v2767, 0.5
        %v2896 = vmul.f32 %v2768, 0.5
        %v2897 = vmul.f32 %v2769, 0.5
        %v2898 = vmul.f32 %v2770, 0.5
        %v2899 = vmul.f32 %v2771, 0.5
        %v2900 = vmul.f32 %v2772, 0.5
        %v2901 = vmul.f32 %v2773, 0.5
        %v2902 = vmul.f32 %v2774, 0.5
        %v2903 = vmul.f32 %v2775, 0.5
        %v2904 = vmul.f32 %v2776, 0.5
        %v2905 = vmul.f32 %v2777, 0.5
        %v2906 = vmul.f32 %v2778, 0.5
        %v2907 = vmul.f32 %v2779, 0.5
        %v2908 = vmul.f32 %v2780, 0.5
        %v2909 = vmul.f32 %v2781, 0.5
        %v2910 = vmul.f32 %v2782, 0.5
        %v2911 = vmul.f32 %v2783, 0.5
        %v2912 = vmul.f32 %v2784, 0.5
        %v2913 = vmul.f32 %v2785, 0.5
        %v2914 = vmul.f32 %v2786, 0.5
        %v2915 = vmul.f32 %v2787, 0.5
        %2916 = vst [vmem:[%s224] sm:$0xff] %v2788
        %2917 = vst [vmem:[%s224 + $0x8] sm:$0xff] %v2789
        %2918 = vst [vmem:[%s224 + $0x10] sm:$0xff] %v2790
        %2919 = vst [vmem:[%s224 + $0x18] sm:$0xff] %v2791
        %2920 = vst [vmem:[%s224 + $0x20] sm:$0xff] %v2792
        %2921 = vst [vmem:[%s224 + $0x28] sm:$0xff] %v2793
        %2922 = vst [vmem:[%s224 + $0x30] sm:$0xff] %v2794
        %2923 = vst [vmem:[%s224 + $0x38] sm:$0xff] %v2795
        %2924 = vst [vmem:[%s224 + $0x40] sm:$0xff] %v2796
        %2925 = vst [vmem:[%s224 + $0x48] sm:$0xff] %v2797
        %2926 = vst [vmem:[%s224 + $0x50] sm:$0xff] %v2798
        %2927 = vst [vmem:[%s224 + $0x58] sm:$0xff] %v2799
        %2928 = vst [vmem:[%s224 + $0x60] sm:$0xff] %v2800
        %2929 = vst [vmem:[%s224 + $0x68] sm:$0xff] %v2801
        %2930 = vst [vmem:[%s224 + $0x70] sm:$0xff] %v2802
        %2931 = vst [vmem:[%s224 + $0x78] sm:$0xff] %v2803
        %2932 = vst [vmem:[%s224 + $0x80] sm:$0xff] %v2804
        %2933 = vst [vmem:[%s224 + $0x88] sm:$0xff] %v2805
        %2934 = vst [vmem:[%s224 + $0x90] sm:$0xff] %v2806
        %2935 = vst [vmem:[%s224 + $0x98] sm:$0xff] %v2807
        %2936 = vst [vmem:[%s224 + $0xa0] sm:$0xff] %v2808
        %2937 = vst [vmem:[%s224 + $0xa8] sm:$0xff] %v2809
        %2938 = vst [vmem:[%s224 + $0xb0] sm:$0xff] %v2810
        %2939 = vst [vmem:[%s224 + $0xb8] sm:$0xff] %v2811
        %2940 = vst [vmem:[%s224 + $0xc0] sm:$0xff] %v2812
        %2941 = vst [vmem:[%s224 + $0xc8] sm:$0xff] %v2813
        %2942 = vst [vmem:[%s224 + $0xd0] sm:$0xff] %v2814
        %2943 = vst [vmem:[%s224 + $0xd8] sm:$0xff] %v2815
        %2944 = vst [vmem:[%s224 + $0xe0] sm:$0xff] %v2816
        %2945 = vst [vmem:[%s224 + $0xe8] sm:$0xff] %v2817
        %2946 = vst [vmem:[%s224 + $0xf0] sm:$0xff] %v2818
        %2947 = vst [vmem:[%s224 + $0xf8] sm:$0xff] %v2819
        %2948 = vst [vmem:[%s224 + $0x100] sm:$0xff] %v2820
        %2949 = vst [vmem:[%s224 + $0x108] sm:$0xff] %v2821
        %2950 = vst [vmem:[%s224 + $0x110] sm:$0xff] %v2822
        %2951 = vst [vmem:[%s224 + $0x118] sm:$0xff] %v2823
        %2952 = vst [vmem:[%s224 + $0x120] sm:$0xff] %v2824
        %2953 = vst [vmem:[%s224 + $0x128] sm:$0xff] %v2825
        %2954 = vst [vmem:[%s224 + $0x130] sm:$0xff] %v2826
        %2955 = vst [vmem:[%s224 + $0x138] sm:$0xff] %v2827
        %2956 = vst [vmem:[%s224 + $0x140] sm:$0xff] %v2828
        %2957 = vst [vmem:[%s224 + $0x148] sm:$0xff] %v2829
        %2958 = vst [vmem:[%s224 + $0x150] sm:$0xff] %v2830
        %2959 = vst [vmem:[%s224 + $0x158] sm:$0xff] %v2831
        %2960 = vst [vmem:[%s224 + $0x160] sm:$0xff] %v2832
        %2961 = vst [vmem:[%s224 + $0x168] sm:$0xff] %v2833
        %2962 = vst [vmem:[%s224 + $0x170] sm:$0xff] %v2834
        %2963 = vst [vmem:[%s224 + $0x178] sm:$0xff] %v2835
        %2964 = vst [vmem:[%s224 + $0x180] sm:$0xff] %v2836
        %2965 = vst [vmem:[%s224 + $0x188] sm:$0xff] %v2837
        %2966 = vst [vmem:[%s224 + $0x190] sm:$0xff] %v2838
        %2967 = vst [vmem:[%s224 + $0x198] sm:$0xff] %v2839
        %2968 = vst [vmem:[%s224 + $0x1a0] sm:$0xff] %v2840
        %2969 = vst [vmem:[%s224 + $0x1a8] sm:$0xff] %v2841
        %2970 = vst [vmem:[%s224 + $0x1b0] sm:$0xff] %v2842
        %2971 = vst [vmem:[%s224 + $0x1b8] sm:$0xff] %v2843
        %2972 = vst [vmem:[%s224 + $0x1c0] sm:$0xff] %v2844
        %2973 = vst [vmem:[%s224 + $0x1c8] sm:$0xff] %v2845
        %2974 = vst [vmem:[%s224 + $0x1d0] sm:$0xff] %v2846
        %2975 = vst [vmem:[%s224 + $0x1d8] sm:$0xff] %v2847
        %2976 = vst [vmem:[%s224 + $0x1e0] sm:$0xff] %v2848
        %2977 = vst [vmem:[%s224 + $0x1e8] sm:$0xff] %v2849
        %2978 = vst [vmem:[%s224 + $0x1f0] sm:$0xff] %v2850
        %2979 = vst [vmem:[%s224 + $0x1f8] sm:$0xff] %v2851
        %2980 = vst [vmem:[%s224 + $0x200] sm:$0xff] %v2852
        %2981 = vst [vmem:[%s224 + $0x208] sm:$0xff] %v2853
        %2982 = vst [vmem:[%s224 + $0x210] sm:$0xff] %v2854
        %2983 = vst [vmem:[%s224 + $0x218] sm:$0xff] %v2855
        %2984 = vst [vmem:[%s224 + $0x220] sm:$0xff] %v2856
        %2985 = vst [vmem:[%s224 + $0x228] sm:$0xff] %v2857
        %2986 = vst [vmem:[%s224 + $0x230] sm:$0xff] %v2858
        %2987 = vst [vmem:[%s224 + $0x238] sm:$0xff] %v2859
        %2988 = vst [vmem:[%s224 + $0x240] sm:$0xff] %v2860
        %2989 = vst [vmem:[%s224 + $0x248] sm:$0xff] %v2861
        %2990 = vst [vmem:[%s224 + $0x250] sm:$0xff] %v2862
        %2991 = vst [vmem:[%s224 + $0x258] sm:$0xff] %v2863
        %2992 = vst [vmem:[%s224 + $0x260] sm:$0xff] %v2864
        %2993 = vst [vmem:[%s224 + $0x268] sm:$0xff] %v2865
        %2994 = vst [vmem:[%s224 + $0x270] sm:$0xff] %v2866
        %2995 = vst [vmem:[%s224 + $0x278] sm:$0xff] %v2867
        %2996 = vst [vmem:[%s224 + $0x280] sm:$0xff] %v2868
        %2997 = vst [vmem:[%s224 + $0x288] sm:$0xff] %v2869
        %2998 = vst [vmem:[%s224 + $0x290] sm:$0xff] %v2870
        %2999 = vst [vmem:[%s224 + $0x298] sm:$0xff] %v2871
        %3000 = vst [vmem:[%s224 + $0x2a0] sm:$0xff] %v2872
        %3001 = vst [vmem:[%s224 + $0x2a8] sm:$0xff] %v2873
        %3002 = vst [vmem:[%s224 + $0x2b0] sm:$0xff] %v2874
        %3003 = vst [vmem:[%s224 + $0x2b8] sm:$0xff] %v2875
        %3004 = vst [vmem:[%s224 + $0x2c0] sm:$0xff] %v2876
        %3005 = vst [vmem:[%s224 + $0x2c8] sm:$0xff] %v2877
        %3006 = vst [vmem:[%s224 + $0x2d0] sm:$0xff] %v2878
        %3007 = vst [vmem:[%s224 + $0x2d8] sm:$0xff] %v2879
        %3008 = vst [vmem:[%s224 + $0x2e0] sm:$0xff] %v2880
        %3009 = vst [vmem:[%s224 + $0x2e8] sm:$0xff] %v2881
        %3010 = vst [vmem:[%s224 + $0x2f0] sm:$0xff] %v2882
        %3011 = vst [vmem:[%s224 + $0x2f8] sm:$0xff] %v2883
        %3012 = vst [vmem:[%s224 + $0x300] sm:$0xff] %v2884
        %3013 = vst [vmem:[%s224 + $0x308] sm:$0xff] %v2885
        %3014 = vst [vmem:[%s224 + $0x310] sm:$0xff] %v2886
        %3015 = vst [vmem:[%s224 + $0x318] sm:$0xff] %v2887
        %3016 = vst [vmem:[%s224 + $0x320] sm:$0xff] %v2888
        %3017 = vst [vmem:[%s224 + $0x328] sm:$0xff] %v2889
        %3018 = vst [vmem:[%s224 + $0x330] sm:$0xff] %v2890
        %3019 = vst [vmem:[%s224 + $0x338] sm:$0xff] %v2891
        %3020 = vst [vmem:[%s224 + $0x340] sm:$0xff] %v2892
        %3021 = vst [vmem:[%s224 + $0x348] sm:$0xff] %v2893
        %3022 = vst [vmem:[%s224 + $0x350] sm:$0xff] %v2894
        %3023 = vst [vmem:[%s224 + $0x358] sm:$0xff] %v2895
        %3024 = vst [vmem:[%s224 + $0x360] sm:$0xff] %v2896
        %3025 = vst [vmem:[%s224 + $0x368] sm:$0xff] %v2897
        %3026 = vst [vmem:[%s224 + $0x370] sm:$0xff] %v2898
        %3027 = vst [vmem:[%s224 + $0x378] sm:$0xff] %v2899
        %3028 = vst [vmem:[%s224 + $0x380] sm:$0xff] %v2900
        %3029 = vst [vmem:[%s224 + $0x388] sm:$0xff] %v2901
        %3030 = vst [vmem:[%s224 + $0x390] sm:$0xff] %v2902
        %3031 = vst [vmem:[%s224 + $0x398] sm:$0xff] %v2903
        %3032 = vst [vmem:[%s224 + $0x3a0] sm:$0xff] %v2904
        %3033 = vst [vmem:[%s224 + $0x3a8] sm:$0xff] %v2905
        %3034 = vst [vmem:[%s224 + $0x3b0] sm:$0xff] %v2906
        %3035 = vst [vmem:[%s224 + $0x3b8] sm:$0xff] %v2907
        %3036 = vst [vmem:[%s224 + $0x3c0] sm:$0xff] %v2908
        %3037 = vst [vmem:[%s224 + $0x3c8] sm:$0xff] %v2909
        %3038 = vst [vmem:[%s224 + $0x3d0] sm:$0xff] %v2910
        %3039 = vst [vmem:[%s224 + $0x3d8] sm:$0xff] %v2911
        %3040 = vst [vmem:[%s224 + $0x3e0] sm:$0xff] %v2912
        %3041 = vst [vmem:[%s224 + $0x3e8] sm:$0xff] %v2913
        %3042 = vst [vmem:[%s224 + $0x3f0] sm:$0xff] %v2914
        %3043 = vst [vmem:[%s224 + $0x3f8] sm:$0xff] %v2915
        %s3044 = sand.u32 %s100, 1
        %s3045 = scalar_lea.sflag [#allocation4], %s3044
        %s3046 = sand.u32 %s100, 1
        %s3047 = smul.addr %s3046, 1024
        %s3048 = scalar_lea.vmem [#allocation7], %s3047
        // Predicated region
        $region37: #{tpu_custom_call.1} parent=27 // pred_check
          %p3049 = pneg %p110
        $region38: #{tpu_custom_call.1} parent=27 // pred_check_branch
          %3051 = sbr.rel (%p3049) target = $region40
        $region39: #{tpu_custom_call.1} parent=27 // pred_region
          %s3052 = smul.u32 32, %s27
          %s3054 = ssub.s32 16384, 16384
          %3055 = vsyncadd %s3045, %s3054
          %s3056 = smul.addr %s3052, 4
          %s3057 = smul.addr %s26, 128
          %s3058 = sadd.s32 %s3056, %s3057
          %s3059 = smul.addr %s3058, 128
          %s3060 = scalar_lea.hbm %s2, %s3059
          %s3061 = sshll.u32 %s3048, 4
          %s3062 = int_to_ptr.vmem [resolvable:$true] %s3061
          %3067 = dma.vmem_to_hbm [thread:$0]  %s3062, 16384, %s3060, %s3045, 128, 128, 8
        $region40: #{tpu_custom_call.1} parent=27 // pred_fallthru
          _
      $region28: #{tpu_custom_call.1} parent=5 // pred_fallthru
        _
      %p3068 = scmp.le.s32.totalorder 2, %s17
      // Predicated region
      $region41: #{tpu_custom_call.1} parent=5 // pred_check
        %p3069 = pneg %p3068
      $region42: #{tpu_custom_call.1} parent=5 // pred_check_branch
        %3071 = sbr.rel (%p3069) target = $region44
      $region43: #{tpu_custom_call.1} parent=5 // pred_region
        %s3072 = ssub.s32 %s17, 2
        // Predicated region
        $region45: #{tpu_custom_call.1} parent=43 // pred_check
          %p3073 = pneg %p116
        $region46: #{tpu_custom_call.1} parent=43 // pred_check_branch
          %3075 = sbr.rel (%p3073) target = $region48
        $region47: #{tpu_custom_call.1} parent=43 // pred_region
          %s3076 = sand.u32 %s101, 1
          %s3077 = scalar_lea.sflag [#allocation4], %s3076
          %s3078 = sand.u32 %s101, 1
          %s3079 = smul.addr %s3078, 1024
          %s3080 = scalar_lea.vmem [#allocation7], %s3079
          %3081 = dma.done %s3077, 16384
        $region48: #{tpu_custom_call.1} parent=43 // pred_fallthru
          _
      $region44: #{tpu_custom_call.1} parent=5 // pred_fallthru
        _
    $region6: #{tpu_custom_call.1} parent=1 // loop_footer
      %s21 = sadd.s32 1, %s17
    $region7: #{tpu_custom_call.1} parent=1 // loop_footer_branch
      %16 = sbr.rel target = $region3
    $region8: #{tpu_custom_call.1} parent=1 // loop_exit
      _
    %3082 = vsyncpa [#allocation3], 1
    %s3083 = scalar_lea.sflag [#allocation3], 1
    %3084 = vsyncpa %s3083, 1
    %3085 = vsyncpa [#allocation6], 1
    %s3086 = scalar_lea.sflag [#allocation6], 1
    %3087 = vsyncpa %s3086, 1
    %3088 = vsyncpa [#allocation4], 1
    %s3089 = scalar_lea.sflag [#allocation4], 1
    %3090 = vsyncpa %s3089, 1

</llo_original>
